<compile_context>
chip_gen: v5e
topology: v5e:2x2
jax: 0.10.0
libtpu: 0.0.40
codegen_flags: <defaults>
</compile_context>

<pallas_src>
import functools

import jax
import jax.numpy as jnp
from jax import lax
from jax.experimental import pallas as pl
from jax.experimental.pallas import tpu as pltpu


def _round_up(x, m):
    return ((x + m - 1) // m) * m


def _vmem_capacity_bytes():
    """Generation-aware VMEM query; conservative (v7x-sized) fallback."""
    try:
        return int(pltpu.get_tpu_info().vmem_capacity_bytes)
    except Exception:
        return 64 * 1024 * 1024


def _convlstm_kernel(z_ref, w_ref, c_ref, h_out_ref, c_out_ref, patch_ref, *,
                     taps, Cp, Wp, Np, Ktaps, Kpad, Cout):
    # Block shapes (one batch element x one row band, leading dims squeezed):
    #   z_ref:     (Cp, Lz)        bf16  halo'd, W-padded, flat x|h band
    #   w_ref:     (4*Cout, Kpad)  bf16  fused gate weights (+ bias column)
    #   c_ref:     (Cout, Np)      f32   previous cell state (lane-dense)
    #   h_out_ref: (Cout, Np)            new hidden state
    #   c_out_ref: (Cout, Np)      f32   new cell state
    #   patch_ref: (Kpad, Np)      bf16  in-VMEM im2col slab (scratch)

    # Build the im2col slab in VMEM: one lane-shifted slice per conv tap.
    # Sublane offsets are multiples of 8 (Cp is 8-aligned); the lane shifts are
    # static and small (XLU realignment, hidden under the MXU/HBM time).
    for t, (ky, kx) in enumerate(taps):
        shift = ky * Wp + kx
        patch_ref[t * Cp:(t + 1) * Cp, :] = z_ref[:, shift:shift + Np]
    # K-padding rows are all ones: the weight column at Ktaps carries the bias
    # (bias folded into the matmul), the remaining pad columns are zero.
    patch_ref[Ktaps:Kpad, :] = jnp.ones((Kpad - Ktaps, Np), dtype=patch_ref.dtype)

    # Single deep matmul on the MXU: (4*Cout, Kpad) @ (Kpad, Np), f32 accum.
    gates = jnp.dot(w_ref[...], patch_ref[...],
                    preferred_element_type=jnp.float32)

    # Gate slices are sublane slices; Cout is assumed 8-aligned (Cout=32 here),
    # other values stay correct but trigger sublane relayouts.
    i_g = jax.nn.sigmoid(gates[0 * Cout:1 * Cout])
    f_g = jax.nn.sigmoid(gates[1 * Cout:2 * Cout])
    g_g = jnp.tanh(gates[2 * Cout:3 * Cout])
    o_g = jax.nn.sigmoid(gates[3 * Cout:4 * Cout])

    c_new = f_g * c_ref[...] + i_g * g_g
    h_new = o_g * jnp.tanh(c_new)

    h_out_ref[...] = h_new.astype(h_out_ref.dtype)
    c_out_ref[...] = c_new.astype(c_out_ref.dtype)


@jax.jit
def convlstm_cell_forward(x, hstate, cstate, input_weight, hidden_weight, bias):
    """ConvLSTMCell.forward.

    x:             (B, Cin,  H, W)   NCHW
    hstate/cstate: (B, Cout, H, W)   NCHW
    input_weight:  (4*Cout, Cin,  KH, KW)  OIHW
    hidden_weight: (4*Cout, Cout, KH, KW)  OIHW
    bias:          (4*Cout,)
    Returns (h, [h, c]) with h in x.dtype and c in float32 (NCHW).
    """
    B, Cin, H, W = x.shape
    Cout = cstate.shape[1]
    KH, KW = input_weight.shape[2], input_weight.shape[3]
    # TODO(synk): even kernel sizes / stride != 1 / non-'same' padding not handled.
    ph, pw = (KH - 1) // 2, (KW - 1) // 2
    Wp = W + 2 * pw                      # W incl. 'same' padding columns
    C = Cin + Cout
    Cp = _round_up(C, 8)                 # sublane-aligned per-tap channel block
    Ktaps = KH * KW * Cp
    Kpad = _round_up(Ktaps + 1, 128)     # +1 ones-row for the folded bias

    # ---- VMEM-derived, generation-aware spatial tiling (row bands) ----------
    vmem_cap = _vmem_capacity_bytes()
    target_lanes = 4096 if vmem_cap >= (100 << 20) else 2048
    TH = max(1, min(H, target_lanes // Wp))    # output rows per band
    S = -(-H // TH)                            # number of bands
    TH = -(-H // S)                            # rebalance so junk rows < S
    Hpad = S * TH
    Np = _round_up(TH * Wp, 128)               # lane width per band (128-dense)
    Lz = Np + (KH - 1) * Wp + (KW - 1)         # z band length incl. tap halo
    Lz_r = _round_up(Lz, 128)

    taps = tuple((ky, kx) for ky in range(KH) for kx in range(KW))

    # ---- fused x|h operand: channel-pad, 'same'-pad, flatten, band ----------
    z = jnp.concatenate([x, hstate], axis=1).astype(jnp.bfloat16)     # (B,C,H,W)
    z = jnp.pad(z, ((0, 0), (0, Cp - C),
                    (ph, Hpad - H + ph), (pw, pw)))                   # (B,Cp,Hpad+2ph,Wp)
    z_flat = z.reshape(B, Cp, (Hpad + 2 * ph) * Wp)
    need = (S - 1) * TH * Wp + Lz_r
    if need > z_flat.shape[-1]:
        z_flat = jnp.pad(z_flat, ((0, 0), (0, 0), (0, need - z_flat.shape[-1])))
    if S == 1:
        zb = z_flat[:, None, :, :Lz_r]                                # free reshape
    else:
        # TODO(synk): overlapping row bands are materialized here (~(TH+2ph)/TH
        # extra z traffic); replace with pl.Element halo offsets or a manual
        # pl.ANY + pltpu.make_async_copy band fetch to remove even that.
        zb = jnp.stack([z_flat[:, :, s * TH * Wp: s * TH * Wp + Lz_r]
                        for s in range(S)], axis=1)                   # (B,S,Cp,Lz_r)

    # ---- fused gate weights, bias folded into column Ktaps ------------------
    wz = jnp.concatenate([input_weight, hidden_weight], axis=1)       # (4Cout,C,KH,KW)
    wz = jnp.pad(wz, ((0, 0), (0, Cp - C), (0, 0), (0, 0)))
    w_taps = jnp.transpose(wz, (0, 2, 3, 1)).reshape(4 * Cout, Ktaps)
    w_full = jnp.concatenate(
        [w_taps,
         bias.astype(w_taps.dtype).reshape(4 * Cout, 1),
         jnp.zeros((4 * Cout, Kpad - Ktaps - 1), w_taps.dtype)], axis=1)
    w_full = w_full.astype(jnp.bfloat16)                              # (4Cout,Kpad)

    # ---- cell state in banded, lane-dense layout, always float32 ------------
    c_f32 = cstate.astype(jnp.float32)
    c_pad = jnp.pad(c_f32, ((0, 0), (0, 0), (0, Hpad - H), (0, Wp - W)))
    c_band = c_pad.reshape(B, Cout, S, TH * Wp)
    c_band = jnp.pad(c_band, ((0, 0), (0, 0), (0, 0), (0, Np - TH * Wp)))
    c_in = c_band.reshape(B, Cout, S * Np)

    kernel = functools.partial(_convlstm_kernel, taps=taps, Cp=Cp, Wp=Wp, Np=Np,
                               Ktaps=Ktaps, Kpad=Kpad, Cout=Cout)

    h_flat, c_flat = pl.pallas_call(
        kernel,
        out_shape=(
            jax.ShapeDtypeStruct((B, Cout, S * Np), x.dtype),       # h
            jax.ShapeDtypeStruct((B, Cout, S * Np), jnp.float32),   # c (f32 always)
        ),
        grid=(B, S),
        in_specs=[
            pl.BlockSpec((pl.Squeezed(), pl.Squeezed(), Cp, Lz_r),
                         lambda b, s: (b, s, 0, 0)),
            pl.BlockSpec((4 * Cout, Kpad), lambda b, s: (0, 0)),
            pl.BlockSpec((pl.Squeezed(), Cout, Np), lambda b, s: (b, 0, s)),
        ],
        out_specs=(
            pl.BlockSpec((pl.Squeezed(), Cout, Np), lambda b, s: (b, 0, s)),
            pl.BlockSpec((pl.Squeezed(), Cout, Np), lambda b, s: (b, 0, s)),
        ),
        scratch_shapes=[pltpu.VMEM((Kpad, Np), jnp.bfloat16)],
        compiler_params=pltpu.CompilerParams(
            dimension_semantics=("parallel", "parallel"),
            vmem_limit_bytes=int(min(vmem_cap // 2, 96 * 1024 * 1024))),
    )(zb, w_full, c_in)

    # ---- un-band: (B, Cout, S*Np) -> NCHW, drop lane/row padding ------------
    def unband(o):
        o = o.reshape(B, Cout, S, Np)[:, :, :, :TH * Wp]
        o = o.reshape(B, Cout, Hpad, Wp)[:, :, :H, :W]
        return o

    h_new = unband(h_flat)
    c_new = unband(c_flat)
    return h_new, [h_new, c_new]


def _reference_forward(x, hstate, cstate, wi, wh, b):
    """Pure-JAX f32 reference mirroring the PyTorch forward (NCHW, OIHW)."""
    dn = ("NCHW", "OIHW", "NCHW")
    x_t = lax.conv_general_dilated(x, wi, (1, 1), "SAME", dimension_numbers=dn)
    x_t = x_t + b[None, :, None, None]
    h_t = lax.conv_general_dilated(hstate, wh, (1, 1), "SAME", dimension_numbers=dn)
    Cout = cstate.shape[1]
    i = jax.nn.sigmoid(x_t[:, :Cout] + h_t[:, :Cout])
    f = jax.nn.sigmoid(x_t[:, Cout:2 * Cout] + h_t[:, Cout:2 * Cout])
    c = f * cstate + i * jnp.tanh(x_t[:, 2 * Cout:3 * Cout]
                                  + h_t[:, 2 * Cout:3 * Cout])
    o = jax.nn.sigmoid(x_t[:, 3 * Cout:] + h_t[:, 3 * Cout:])
    h = o * jnp.tanh(c)
    return h, c


if __name__ == "__main__":
    # Small shapes consistent with the module.
    B, Cin, Cout, H, W, Ksz = 2, 4, 32, 16, 16, 3

    key = jax.random.PRNGKey(0)
    k1, k2, k3, k4, k5, k6 = jax.random.split(key, 6)

    # Deterministic kaiming-uniform-style init (a=sqrt(5) => bound = 1/sqrt(fan_in)).
    fan_in_x = Cin * Ksz * Ksz
    fan_in_h = Cout * Ksz * Ksz
    bi = 1.0 / jnp.sqrt(float(fan_in_x))
    bh = 1.0 / jnp.sqrt(float(fan_in_h))
    input_weight = jax.random.uniform(k1, (4 * Cout, Cin, Ksz, Ksz),
                                      jnp.float32, -bi, bi)
    hidden_weight = jax.random.uniform(k2, (4 * Cout, Cout, Ksz, Ksz),
                                       jnp.float32, -bh, bh)
    bias = jax.random.uniform(k3, (4 * Cout,), jnp.float32, -bi, bi)

    x = jax.random.normal(k4, (B, Cin, H, W), jnp.float32)
    hstate = jax.random.normal(k5, (B, Cout, H, W), jnp.float32)
    cstate = jax.random.normal(k6, (B, Cout, H, W), jnp.float32)

    h_out, (h_out2, c_out) = convlstm_cell_forward(
        x, hstate, cstate, input_weight, hidden_weight, bias)
    jax.block_until_ready((h_out, c_out))

    # Correctness check against a pure-JAX f32 reference (bf16 matmul -> looser tol).
    h_ref, c_ref = _reference_forward(x, hstate, cstate,
                                      input_weight, hidden_weight, bias)
    assert h_out.shape == (B, Cout, H, W) and c_out.shape == (B, Cout, H, W)
    assert jnp.allclose(h_out, h_ref, atol=2e-2, rtol=2e-2), "h mismatch"
    assert jnp.allclose(c_out, c_ref, atol=2e-2, rtol=2e-2), "c mismatch"

    print("KERNEL_OK")
</pallas_src>

<mosaic_0001>
module attributes {stable_mosaic.version = 11 : i64} {
  func.func @_convlstm_kernel(%arg0: i32, %arg1: i32, %arg2: memref<1x1x40x512xbf16, #tpu.memory_space<vmem>>, %arg3: memref<128x384xbf16, #tpu.memory_space<vmem>>, %arg4: memref<1x32x384xf32, #tpu.memory_space<vmem>>, %arg5: memref<1x32x384xf32, #tpu.memory_space<vmem>>, %arg6: memref<1x32x384xf32, #tpu.memory_space<vmem>>, %arg7: memref<384x384xbf16, #tpu.memory_space<vmem>>) attributes {dimension_semantics = [#tpu.dimension_semantics<parallel>, #tpu.dimension_semantics<parallel>], iteration_bounds = array<i64: 2, 1>, scalar_prefetch = 0 : i64, scratch_operands = 1 : i64, tpu.core_type = #tpu.core_type<tc>, window_params = [{transform_indices = @transform_0, window_bounds = array<i64: 1, 1, 40, 512>}, {pipeline_mode = #tpu.pipeline_mode<synchronous>, transform_indices = @transform_1, window_bounds = array<i64: 128, 384>}, {transform_indices = @transform_2, window_bounds = array<i64: 1, 32, 384>}, {transform_indices = @transform_3, window_bounds = array<i64: 1, 32, 384>}, {transform_indices = @transform_4, window_bounds = array<i64: 1, 32, 384>}]} {
    %c0 = arith.constant 0 : index
    %c0_0 = arith.constant 0 : index
    %c0_1 = arith.constant 0 : index
    %c0_2 = arith.constant 0 : index
    %0 = vector.load %arg2[%c0, %c0_0, %c0_1, %c0_2] : memref<1x1x40x512xbf16, #tpu.memory_space<vmem>>, vector<1x1x40x384xbf16>
    %1 = vector.shape_cast %0 : vector<1x1x40x384xbf16> to vector<40x384xbf16>
    %c0_3 = arith.constant 0 : index
    %c0_4 = arith.constant 0 : index
    %2 = vector.load %arg7[%c0_3, %c0_4] : memref<384x384xbf16, #tpu.memory_space<vmem>>, vector<40x384xbf16>
    tpu.vector_store %arg7[%c0_3, %c0_4], %1 {strides = array<i32>} : memref<384x384xbf16, #tpu.memory_space<vmem>>, vector<40x384xbf16>,
    %c0_5 = arith.constant 0 : index
    %c0_6 = arith.constant 0 : index
    %c0_7 = arith.constant 0 : index
    %c1 = arith.constant 1 : index
    %3 = vector.load %arg2[%c0_5, %c0_6, %c0_7, %c1] : memref<1x1x40x512xbf16, #tpu.memory_space<vmem>>, vector<1x1x40x384xbf16>
    %4 = vector.shape_cast %3 : vector<1x1x40x384xbf16> to vector<40x384xbf16>
    %c40 = arith.constant 40 : index
    %c0_8 = arith.constant 0 : index
    %5 = vector.load %arg7[%c40, %c0_8] : memref<384x384xbf16, #tpu.memory_space<vmem>>, vector<40x384xbf16>
    tpu.vector_store %arg7[%c40, %c0_8], %4 {strides = array<i32>} : memref<384x384xbf16, #tpu.memory_space<vmem>>, vector<40x384xbf16>,
    %c0_9 = arith.constant 0 : index
    %c0_10 = arith.constant 0 : index
    %c0_11 = arith.constant 0 : index
    %c2 = arith.constant 2 : index
    %6 = vector.load %arg2[%c0_9, %c0_10, %c0_11, %c2] : memref<1x1x40x512xbf16, #tpu.memory_space<vmem>>, vector<1x1x40x384xbf16>
    %7 = vector.shape_cast %6 : vector<1x1x40x384xbf16> to vector<40x384xbf16>
    %c80 = arith.constant 80 : index
    %c0_12 = arith.constant 0 : index
    %8 = vector.load %arg7[%c80, %c0_12] : memref<384x384xbf16, #tpu.memory_space<vmem>>, vector<40x384xbf16>
    tpu.vector_store %arg7[%c80, %c0_12], %7 {strides = array<i32>} : memref<384x384xbf16, #tpu.memory_space<vmem>>, vector<40x384xbf16>,
    %c0_13 = arith.constant 0 : index
    %c0_14 = arith.constant 0 : index
    %c0_15 = arith.constant 0 : index
    %c18 = arith.constant 18 : index
    %9 = vector.load %arg2[%c0_13, %c0_14, %c0_15, %c18] : memref<1x1x40x512xbf16, #tpu.memory_space<vmem>>, vector<1x1x40x384xbf16>
    %10 = vector.shape_cast %9 : vector<1x1x40x384xbf16> to vector<40x384xbf16>
    %c120 = arith.constant 120 : index
    %c0_16 = arith.constant 0 : index
    %11 = vector.load %arg7[%c120, %c0_16] : memref<384x384xbf16, #tpu.memory_space<vmem>>, vector<40x384xbf16>
    tpu.vector_store %arg7[%c120, %c0_16], %10 {strides = array<i32>} : memref<384x384xbf16, #tpu.memory_space<vmem>>, vector<40x384xbf16>,
    %c0_17 = arith.constant 0 : index
    %c0_18 = arith.constant 0 : index
    %c0_19 = arith.constant 0 : index
    %c19 = arith.constant 19 : index
    %12 = vector.load %arg2[%c0_17, %c0_18, %c0_19, %c19] : memref<1x1x40x512xbf16, #tpu.memory_space<vmem>>, vector<1x1x40x384xbf16>
    %13 = vector.shape_cast %12 : vector<1x1x40x384xbf16> to vector<40x384xbf16>
    %c160 = arith.constant 160 : index
    %c0_20 = arith.constant 0 : index
    %14 = vector.load %arg7[%c160, %c0_20] : memref<384x384xbf16, #tpu.memory_space<vmem>>, vector<40x384xbf16>
    tpu.vector_store %arg7[%c160, %c0_20], %13 {strides = array<i32>} : memref<384x384xbf16, #tpu.memory_space<vmem>>, vector<40x384xbf16>,
    %c0_21 = arith.constant 0 : index
    %c0_22 = arith.constant 0 : index
    %c0_23 = arith.constant 0 : index
    %c20 = arith.constant 20 : index
    %15 = vector.load %arg2[%c0_21, %c0_22, %c0_23, %c20] : memref<1x1x40x512xbf16, #tpu.memory_space<vmem>>, vector<1x1x40x384xbf16>
    %16 = vector.shape_cast %15 : vector<1x1x40x384xbf16> to vector<40x384xbf16>
    %c200 = arith.constant 200 : index
    %c0_24 = arith.constant 0 : index
    %17 = vector.load %arg7[%c200, %c0_24] : memref<384x384xbf16, #tpu.memory_space<vmem>>, vector<40x384xbf16>
    tpu.vector_store %arg7[%c200, %c0_24], %16 {strides = array<i32>} : memref<384x384xbf16, #tpu.memory_space<vmem>>, vector<40x384xbf16>,
    %c0_25 = arith.constant 0 : index
    %c0_26 = arith.constant 0 : index
    %c0_27 = arith.constant 0 : index
    %c36 = arith.constant 36 : index
    %18 = vector.load %arg2[%c0_25, %c0_26, %c0_27, %c36] : memref<1x1x40x512xbf16, #tpu.memory_space<vmem>>, vector<1x1x40x384xbf16>
    %19 = vector.shape_cast %18 : vector<1x1x40x384xbf16> to vector<40x384xbf16>
    %c240 = arith.constant 240 : index
    %c0_28 = arith.constant 0 : index
    %20 = vector.load %arg7[%c240, %c0_28] : memref<384x384xbf16, #tpu.memory_space<vmem>>, vector<40x384xbf16>
    tpu.vector_store %arg7[%c240, %c0_28], %19 {strides = array<i32>} : memref<384x384xbf16, #tpu.memory_space<vmem>>, vector<40x384xbf16>,
    %c0_29 = arith.constant 0 : index
    %c0_30 = arith.constant 0 : index
    %c0_31 = arith.constant 0 : index
    %c37 = arith.constant 37 : index
    %21 = vector.load %arg2[%c0_29, %c0_30, %c0_31, %c37] : memref<1x1x40x512xbf16, #tpu.memory_space<vmem>>, vector<1x1x40x384xbf16>
    %22 = vector.shape_cast %21 : vector<1x1x40x384xbf16> to vector<40x384xbf16>
    %c280 = arith.constant 280 : index
    %c0_32 = arith.constant 0 : index
    %23 = vector.load %arg7[%c280, %c0_32] : memref<384x384xbf16, #tpu.memory_space<vmem>>, vector<40x384xbf16>
    tpu.vector_store %arg7[%c280, %c0_32], %22 {strides = array<i32>} : memref<384x384xbf16, #tpu.memory_space<vmem>>, vector<40x384xbf16>,
    %c0_33 = arith.constant 0 : index
    %c0_34 = arith.constant 0 : index
    %c0_35 = arith.constant 0 : index
    %c38 = arith.constant 38 : index
    %24 = vector.load %arg2[%c0_33, %c0_34, %c0_35, %c38] : memref<1x1x40x512xbf16, #tpu.memory_space<vmem>>, vector<1x1x40x384xbf16>
    %25 = vector.shape_cast %24 : vector<1x1x40x384xbf16> to vector<40x384xbf16>
    %c320 = arith.constant 320 : index
    %c0_36 = arith.constant 0 : index
    %26 = vector.load %arg7[%c320, %c0_36] : memref<384x384xbf16, #tpu.memory_space<vmem>>, vector<40x384xbf16>
    tpu.vector_store %arg7[%c320, %c0_36], %25 {strides = array<i32>} : memref<384x384xbf16, #tpu.memory_space<vmem>>, vector<40x384xbf16>,
    %cst = arith.constant 1.000000e+00 : bf16
    %27 = vector.broadcast %cst : bf16 to vector<24x384xbf16>
    %c360 = arith.constant 360 : index
    %c0_37 = arith.constant 0 : index
    %28 = vector.load %arg7[%c360, %c0_37] : memref<384x384xbf16, #tpu.memory_space<vmem>>, vector<24x384xbf16>
    tpu.vector_store %arg7[%c360, %c0_37], %27 {strides = array<i32>} : memref<384x384xbf16, #tpu.memory_space<vmem>>, vector<24x384xbf16>,
    %c0_38 = arith.constant 0 : index
    %c0_39 = arith.constant 0 : index
    %29 = vector.load %arg3[%c0_38, %c0_39] : memref<128x384xbf16, #tpu.memory_space<vmem>>, vector<128x384xbf16>
    %c0_40 = arith.constant 0 : index
    %c0_41 = arith.constant 0 : index
    %30 = vector.load %arg7[%c0_40, %c0_41] : memref<384x384xbf16, #tpu.memory_space<vmem>>, vector<384x384xbf16>
    %cst_42 = arith.constant dense<0.000000e+00> : vector<128x384xf32>
    %31 = tpu.matmul %29, %30, %cst_42 {dimension_numbers = #tpu.dot_dimension_numbers<[1], [0], [0], [1], [0, 0, 1, 1], [], []>} : vector<128x384xbf16>, vector<384x384xbf16>, vector<128x384xf32> -> vector<128x384xf32>
    %32 = vector.extract_strided_slice %31 {offsets = [0, 0], sizes = [32, 384], strides = [1, 1]} : vector<128x384xf32> to vector<32x384xf32>
    %33 = arith.negf %32 : vector<32x384xf32>
    %34 = math.exp %33 : vector<32x384xf32>
    %cst_43 = arith.constant 1.000000e+00 : f32
    %35 = vector.broadcast %cst_43 : f32 to vector<32x384xf32>
    %36 = arith.addf %35, %34 : vector<32x384xf32>
    %37 = arith.divf %35, %36 : vector<32x384xf32>
    %38 = vector.extract_strided_slice %31 {offsets = [32, 0], sizes = [32, 384], strides = [1, 1]} : vector<128x384xf32> to vector<32x384xf32>
    %39 = arith.negf %38 : vector<32x384xf32>
    %40 = math.exp %39 : vector<32x384xf32>
    %cst_44 = arith.constant 1.000000e+00 : f32
    %41 = vector.broadcast %cst_44 : f32 to vector<32x384xf32>
    %42 = arith.addf %41, %40 : vector<32x384xf32>
    %43 = arith.divf %41, %42 : vector<32x384xf32>
    %44 = vector.extract_strided_slice %31 {offsets = [64, 0], sizes = [32, 384], strides = [1, 1]} : vector<128x384xf32> to vector<32x384xf32>
    %45 = math.tanh %44 : vector<32x384xf32>
    %46 = vector.extract_strided_slice %31 {offsets = [96, 0], sizes = [32, 384], strides = [1, 1]} : vector<128x384xf32> to vector<32x384xf32>
    %47 = arith.negf %46 : vector<32x384xf32>
    %48 = math.exp %47 : vector<32x384xf32>
    %cst_45 = arith.constant 1.000000e+00 : f32
    %49 = vector.broadcast %cst_45 : f32 to vector<32x384xf32>
    %50 = arith.addf %49, %48 : vector<32x384xf32>
    %51 = arith.divf %49, %50 : vector<32x384xf32>
    %c0_46 = arith.constant 0 : index
    %c0_47 = arith.constant 0 : index
    %c0_48 = arith.constant 0 : index
    %52 = vector.load %arg4[%c0_46, %c0_47, %c0_48] : memref<1x32x384xf32, #tpu.memory_space<vmem>>, vector<1x32x384xf32>
    %53 = vector.shape_cast %52 : vector<1x32x384xf32> to vector<32x384xf32>
    %54 = arith.mulf %43, %53 : vector<32x384xf32>
    %55 = arith.mulf %37, %45 : vector<32x384xf32>
    %56 = arith.addf %54, %55 : vector<32x384xf32>
    %57 = math.tanh %56 : vector<32x384xf32>
    %58 = arith.mulf %51, %57 : vector<32x384xf32>
    %c0_49 = arith.constant 0 : index
    %c0_50 = arith.constant 0 : index
    %c0_51 = arith.constant 0 : index
    %59 = vector.load %arg5[%c0_49, %c0_50, %c0_51] : memref<1x32x384xf32, #tpu.memory_space<vmem>>, vector<1x32x384xf32>
    %60 = vector.shape_cast %59 : vector<1x32x384xf32> to vector<32x384xf32>
    %61 = vector.shape_cast %58 : vector<32x384xf32> to vector<1x32x384xf32>
    tpu.vector_store %arg5[%c0_49, %c0_50, %c0_51], %61 {strides = array<i32>} : memref<1x32x384xf32, #tpu.memory_space<vmem>>, vector<1x32x384xf32>,
    %c0_52 = arith.constant 0 : index
    %c0_53 = arith.constant 0 : index
    %c0_54 = arith.constant 0 : index
    %62 = vector.load %arg6[%c0_52, %c0_53, %c0_54] : memref<1x32x384xf32, #tpu.memory_space<vmem>>, vector<1x32x384xf32>
    %63 = vector.shape_cast %62 : vector<1x32x384xf32> to vector<32x384xf32>
    %64 = vector.shape_cast %56 : vector<32x384xf32> to vector<1x32x384xf32>
    tpu.vector_store %arg6[%c0_52, %c0_53, %c0_54], %64 {strides = array<i32>} : memref<1x32x384xf32, #tpu.memory_space<vmem>>, vector<1x32x384xf32>,
    return
  }
  func.func @transform_0(%arg0: i32, %arg1: i32) -> (i32, i32, i32, i32) {
    %c0_i32 = arith.constant 0 : i32
    %c0_i32_0 = arith.constant 0 : i32
    %c0_i32_1 = arith.constant 0 : i32
    return %arg0, %arg1, %c0_i32, %c0_i32_0 : i32, i32, i32, i32
  }
  func.func @transform_1(%arg0: i32, %arg1: i32) -> (i32, i32) {
    %c0_i32 = arith.constant 0 : i32
    %c0_i32_0 = arith.constant 0 : i32
    %c0_i32_1 = arith.constant 0 : i32
    return %c0_i32, %c0_i32_0 : i32, i32
  }
  func.func @transform_2(%arg0: i32, %arg1: i32) -> (i32, i32, i32) {
    %c0_i32 = arith.constant 0 : i32
    %c0_i32_0 = arith.constant 0 : i32
    return %arg0, %c0_i32, %arg1 : i32, i32, i32
  }
  func.func @transform_3(%arg0: i32, %arg1: i32) -> (i32, i32, i32) {
    %c0_i32 = arith.constant 0 : i32
    %c0_i32_0 = arith.constant 0 : i32
    return %arg0, %c0_i32, %arg1 : i32, i32, i32
  }
  func.func @transform_4(%arg0: i32, %arg1: i32) -> (i32, i32, i32) {
    %c0_i32 = arith.constant 0 : i32
    %c0_i32_0 = arith.constant 0 : i32
    return %arg0, %c0_i32, %arg1 : i32, i32, i32
  }
}

</mosaic_0001>

<llo_original>
// kernel: convlstm_cell_forward.1
$region0: #{convlstm_cell_forward.1}
  #allocation0 [shape = 'u32[]', space=smem, size = 0x4, offset = 0x4, fixed_abs, tag = 'smem constant byte address 0x4 - core index']
  #allocation1 [shape = 'u32[72,128]{1,0:T(1,128)}', space=vmem, size = 0x9000, scoped, tag = 'internal scratch']
  #allocation2 [shape = 'bf16[384,384]{1,0:T(8,128)(2,1)}', space=vmem, size = 0x48000, scoped, tag = 'scratch operand']
  %s0 = inlined_call_operand.vmem [shape: bf16[2,1,40,512], index: 0, kind: input, shape index: {}]
  %s1 = inlined_call_operand.vmem [shape: bf16[128,384], index: 1, kind: input, shape index: {}]
  %s2 = inlined_call_operand.vmem [shape: f32[2,32,384], index: 2, kind: input, shape index: {}]
  %s3 = inlined_call_operand.vmem [shape: f32[2,32,384], index: 3, kind: output, shape index: {0}]
  %s4 = inlined_call_operand.vmem [shape: f32[2,32,384], index: 4, kind: output, shape index: {1}]
  %5 = xla_tuple %s3, %s4
  %s6 = sld [smem:[#allocation0]]
  $region53: #{convlstm_cell_forward.1} parent=0
    _
  %s8 = ssub.s32 1, %s6
  %s9 = scalar_select 0, %s8, %s6
  loop: start=0, step=1, limit=4
  $region2: #{convlstm_cell_forward.1} parent=0 // loop_pre_header
    _
  $region3: #{convlstm_cell_forward.1} parent=0 // loop_header
    %s11 = sphi 0, %s15
    %p12 = scmp.ge.s32.totalorder %s11, 4
    %s18 = sphi 0, %s30
    %s19 = sphi 0, %s26
    %s20 = sphi 0, %s18
    %s21 = sphi 0, %s19
    %s22 = sphi 0, %s20
    %s23 = sphi 0, %s21
    %s35 = sphi 0, %s37
    %s38 = sphi 0, %s35
    %s39 = sphi 0, %s38
    %s55 = sphi 0, %s39
    %s59 = sphi 0, %s59
    %s61 = sphi 0, %s59
    %s62 = sphi 0, %s61
    %s76 = sphi 0, %s62
    %s84 = sphi 0, %s86
    %s87 = sphi 0, %s84
    %s88 = sphi 0, %s87
    %s104 = sphi 0, %s88
    %s112 = sphi 0, %s114
    %s115 = sphi 0, %s112
    %s116 = sphi 0, %s115
    %s132 = sphi 0, %s116
    %s140 = sphi 0, %s142
    %s143 = sphi 0, %s140
    %s144 = sphi 0, %s143
    %s160 = sphi 0, %s144
  $region4: #{convlstm_cell_forward.1} parent=0 // loop_header_branch
    %14 = sbr.rel (%p12) target = $region8
  $region5: #{convlstm_cell_forward.1} parent=0 // loop_body
    %s16 = ssub.s32 %s11, 1
    %s17 = ssub.s32 %s11, 2
    %s24 = sadd.s32 1, %s19
    %p25 = scmp.ge.s32.totalorder %s24, 1
    %s26 = scalar_select %p25, 0, %s24
    %s27 = sadd.s32 1, %s18
    %s28 = scalar_select %p25, %s27, %s18
    %p29 = scmp.ge.s32.totalorder %s28, 2
    %s30 = scalar_select %p29, 0, %s28
    %s31 = ssub.s32 %s18, %s30
    %s32 = ssub.s32 %s19, %s26
    %s33 = sor.u32 %s31, %s32
    %p34 = scmp.eq.s32.totalorder %s33, 0
    %s36 = sadd.s32 %s35, 1
    %s37 = scalar_select %p34, %s35, %s36
    %p40 = pneg %p34
    %p41 = scmp.eq.s32.totalorder %s11, 1
    %p42 = por %p40, %p41
    %p43 = scmp.ne.s32.totalorder %s35, %s38
    %p44 = scmp.eq.s32.totalorder %s11, 0
    %p45 = por %p43, %p44
    %p46 = scmp.ne.s32.totalorder %s35, %s38
    %p47 = scmp.eq.s32.totalorder %s16, 1
    %p48 = por %p46, %p47
    %p49 = scmp.ne.s32.totalorder %s38, %s39
    %p50 = scmp.eq.s32.totalorder %s16, 0
    %p51 = por %p49, %p50
    %p52 = scmp.ne.s32.totalorder %s38, %s39
    %p53 = scmp.eq.s32.totalorder %s17, 1
    %p54 = por %p52, %p53
    %p56 = scmp.ne.s32.totalorder %s39, %s55
    %p57 = scmp.eq.s32.totalorder %s17, 0
    %p58 = por %p56, %p57
    %s60 = sadd.s32 %s59, 1
    %p63 = scmp.eq.s32.totalorder %s11, 1
    %p64 = scmp.ne.s32.totalorder %s59, %s61
    %p65 = scmp.eq.s32.totalorder %s11, 0
    %p66 = por %p64, %p65
    %p67 = scmp.ne.s32.totalorder %s59, %s61
    %p68 = scmp.eq.s32.totalorder %s16, 1
    %p69 = por %p67, %p68
    %p70 = scmp.ne.s32.totalorder %s61, %s62
    %p71 = scmp.eq.s32.totalorder %s16, 0
    %p72 = por %p70, %p71
    %p73 = scmp.ne.s32.totalorder %s61, %s62
    %p74 = scmp.eq.s32.totalorder %s17, 1
    %p75 = por %p73, %p74
    %p77 = scmp.ne.s32.totalorder %s62, %s76
    %p78 = scmp.eq.s32.totalorder %s17, 0
    %p79 = por %p77, %p78
    %s80 = ssub.s32 %s18, %s30
    %s81 = ssub.s32 %s19, %s26
    %s82 = sor.u32 %s80, %s81
    %p83 = scmp.eq.s32.totalorder %s82, 0
    %s85 = sadd.s32 %s84, 1
    %s86 = scalar_select %p83, %s84, %s85
    %p89 = pneg %p83
    %p90 = scmp.eq.s32.totalorder %s11, 1
    %p91 = por %p89, %p90
    %p92 = scmp.ne.s32.totalorder %s84, %s87
    %p93 = scmp.eq.s32.totalorder %s11, 0
    %p94 = por %p92, %p93
    %p95 = scmp.ne.s32.totalorder %s84, %s87
    %p96 = scmp.eq.s32.totalorder %s16, 1
    %p97 = por %p95, %p96
    %p98 = scmp.ne.s32.totalorder %s87, %s88
    %p99 = scmp.eq.s32.totalorder %s16, 0
    %p100 = por %p98, %p99
    %p101 = scmp.ne.s32.totalorder %s87, %s88
    %p102 = scmp.eq.s32.totalorder %s17, 1
    %p103 = por %p101, %p102
    %p105 = scmp.ne.s32.totalorder %s88, %s104
    %p106 = scmp.eq.s32.totalorder %s17, 0
    %p107 = por %p105, %p106
    %s108 = ssub.s32 %s18, %s30
    %s109 = ssub.s32 %s19, %s26
    %s110 = sor.u32 %s108, %s109
    %p111 = scmp.eq.s32.totalorder %s110, 0
    %s113 = sadd.s32 %s112, 1
    %s114 = scalar_select %p111, %s112, %s113
    %p117 = pneg %p111
    %p118 = scmp.eq.s32.totalorder %s11, 1
    %p119 = por %p117, %p118
    %p120 = scmp.ne.s32.totalorder %s112, %s115
    %p121 = scmp.eq.s32.totalorder %s11, 0
    %p122 = por %p120, %p121
    %p123 = scmp.ne.s32.totalorder %s112, %s115
    %p124 = scmp.eq.s32.totalorder %s16, 1
    %p125 = por %p123, %p124
    %p126 = scmp.ne.s32.totalorder %s115, %s116
    %p127 = scmp.eq.s32.totalorder %s16, 0
    %p128 = por %p126, %p127
    %p129 = scmp.ne.s32.totalorder %s115, %s116
    %p130 = scmp.eq.s32.totalorder %s17, 1
    %p131 = por %p129, %p130
    %p133 = scmp.ne.s32.totalorder %s116, %s132
    %p134 = scmp.eq.s32.totalorder %s17, 0
    %p135 = por %p133, %p134
    %s136 = ssub.s32 %s18, %s30
    %s137 = ssub.s32 %s19, %s26
    %s138 = sor.u32 %s136, %s137
    %p139 = scmp.eq.s32.totalorder %s138, 0
    %s141 = sadd.s32 %s140, 1
    %s142 = scalar_select %p139, %s140, %s141
    %p145 = pneg %p139
    %p146 = scmp.eq.s32.totalorder %s11, 1
    %p147 = por %p145, %p146
    %p148 = scmp.ne.s32.totalorder %s140, %s143
    %p149 = scmp.eq.s32.totalorder %s11, 0
    %p150 = por %p148, %p149
    %p151 = scmp.ne.s32.totalorder %s140, %s143
    %p152 = scmp.eq.s32.totalorder %s16, 1
    %p153 = por %p151, %p152
    %p154 = scmp.ne.s32.totalorder %s143, %s144
    %p155 = scmp.eq.s32.totalorder %s16, 0
    %p156 = por %p154, %p155
    %p157 = scmp.ne.s32.totalorder %s143, %s144
    %p158 = scmp.eq.s32.totalorder %s17, 1
    %p159 = por %p157, %p158
    %p161 = scmp.ne.s32.totalorder %s144, %s160
    %p162 = scmp.eq.s32.totalorder %s17, 0
    %p163 = por %p161, %p162
    %p164 = scmp.le.s32.totalorder 1, %s11
    %p165 = scmp.lt.s32.totalorder %s11, 3
    %p166 = pnand %p164, %p165
    %p167 = pneg %p166
    // Predicated region
    $region9: #{convlstm_cell_forward.1} parent=5 // pred_check
      _
    $region10: #{convlstm_cell_forward.1} parent=5 // pred_check_branch
      %169 = sbr.rel (%p166) target = $region12
    $region11: #{convlstm_cell_forward.1} parent=5 // pred_region
      %s170 = ssub.s32 %s11, 1
      // Predicated region
      $region13: #{convlstm_cell_forward.1} parent=11 // pred_check
        %p171 = pneg %p72
      $region14: #{convlstm_cell_forward.1} parent=11 // pred_check_branch
        %173 = sbr.rel (%p171) target = $region16
      $region15: #{convlstm_cell_forward.1} parent=11 // pred_region
        _
      $region16: #{convlstm_cell_forward.1} parent=11 // pred_fallthru
        _
    $region12: #{convlstm_cell_forward.1} parent=5 // pred_fallthru
      _
    %p174 = scmp.lt.s32.totalorder %s11, 2
    // Predicated region
    $region17: #{convlstm_cell_forward.1} parent=5 // pred_check
      %p175 = pneg %p174
    $region18: #{convlstm_cell_forward.1} parent=5 // pred_check_branch
      %177 = sbr.rel (%p175) target = $region20
    $region19: #{convlstm_cell_forward.1} parent=5 // pred_region
      // Predicated region
      $region21: #{convlstm_cell_forward.1} parent=19 // pred_check
        %p178 = pneg %p45
      $region22: #{convlstm_cell_forward.1} parent=19 // pred_check_branch
        %180 = sbr.rel (%p178) target = $region24
      $region23: #{convlstm_cell_forward.1} parent=19 // pred_region
        %p181 = scmp.lt.s32.totalorder %s18, 1
        %s182 = scalar_select %p181, %s18, 1
        %p183 = scmp.lt.s32.totalorder %s19, 0
        %s184 = scalar_select %p183, %s19, 0
        %s185 = smul.addr %s184, 20
        %s186 = smul.addr %s182, 20
        %s187 = sadd.s32 %s185, %s186
        %s188 = smul.addr %s187, 4
        %s189 = scalar_lea.vmem %s0, %s188
      $region24: #{convlstm_cell_forward.1} parent=19 // pred_fallthru
        _
      // Predicated region
      $region25: #{convlstm_cell_forward.1} parent=19 // pred_check
        %p190 = pneg %p94
      $region26: #{convlstm_cell_forward.1} parent=19 // pred_check_branch
        %192 = sbr.rel (%p190) target = $region28
      $region27: #{convlstm_cell_forward.1} parent=19 // pred_region
        %s193 = smul.u32 3, %s19
        %p194 = scmp.lt.s32.totalorder %s18, 1
        %s195 = scalar_select %p194, %s18, 1
        %p196 = scmp.lt.s32.totalorder %s193, 2
        %s197 = scalar_select %p196, %s193, 2
        %s198 = smul.addr %s195, 12
        %s199 = sadd.s32 %s197, %s198
        %s200 = smul.addr %s199, 8
        %s201 = scalar_lea.vmem %s2, %s200
        %s202 = smul.u32 3, %s19
      $region28: #{convlstm_cell_forward.1} parent=19 // pred_fallthru
        _
    $region20: #{convlstm_cell_forward.1} parent=5 // pred_fallthru
      _
    %p203 = scmp.le.s32.totalorder 1, %s11
    %p204 = scmp.lt.s32.totalorder %s11, 3
    %p205 = pnand %p203, %p204
    %p206 = pneg %p205
    // Predicated region
    $region29: #{convlstm_cell_forward.1} parent=5 // pred_check
      _
    $region30: #{convlstm_cell_forward.1} parent=5 // pred_check_branch
      %208 = sbr.rel (%p205) target = $region32
    $region31: #{convlstm_cell_forward.1} parent=5 // pred_region
      %s209 = ssub.s32 %s11, 1
      %p210 = scmp.lt.s32.totalorder %s20, 1
      %s211 = scalar_select %p210, %s20, 1
      %p212 = scmp.lt.s32.totalorder %s21, 0
      %s213 = scalar_select %p212, %s21, 0
      %s214 = smul.addr %s213, 20
      %s215 = smul.addr %s211, 20
      %s216 = sadd.s32 %s214, %s215
      %s217 = smul.addr %s216, 4
      %s218 = scalar_lea.vmem %s0, %s217
      %p219 = pneg %p51
      %p220 = pneg %p48
      %p221 = pneg %p72
      %p222 = pneg %p69
      %s223 = smul.u32 3, %s21
      %p224 = scmp.lt.s32.totalorder %s20, 1
      %s225 = scalar_select %p224, %s20, 1
      %p226 = scmp.lt.s32.totalorder %s223, 2
      %s227 = scalar_select %p226, %s223, 2
      %s228 = smul.addr %s225, 12
      %s229 = sadd.s32 %s227, %s228
      %s230 = smul.addr %s229, 8
      %s231 = scalar_lea.vmem %s2, %s230
      %p232 = pneg %p100
      %p233 = pneg %p97
      %p234 = pneg %p128
      %p235 = pneg %p125
      %s236 = smul.u32 3, %s21
      %p237 = scmp.lt.s32.totalorder %s20, 1
      %s238 = scalar_select %p237, %s20, 1
      %p239 = scmp.lt.s32.totalorder %s236, 2
      %s240 = scalar_select %p239, %s236, 2
      %s241 = smul.addr %s238, 12
      %s242 = sadd.s32 %s240, %s241
      %s243 = smul.addr %s242, 8
      %s244 = scalar_lea.vmem %s3, %s243
      %p245 = pneg %p156
      %p246 = pneg %p153
      %s247 = smul.u32 3, %s21
      %p248 = scmp.lt.s32.totalorder %s20, 1
      %s249 = scalar_select %p248, %s20, 1
      %p250 = scmp.lt.s32.totalorder %s247, 2
      %s251 = scalar_select %p250, %s247, 2
      %s252 = smul.addr %s249, 12
      %s253 = sadd.s32 %s251, %s252
      %s254 = smul.addr %s253, 8
      %s255 = scalar_lea.vmem %s4, %s254
      %p256 = scmp.lt.s32.totalorder %s20, 1
      %s257 = scalar_select %p256, %s20, 1
      %p258 = scmp.lt.s32.totalorder %s21, 0
      %s259 = scalar_select %p258, %s21, 0
      %s260 = smul.addr %s259, 20
      %s261 = smul.addr %s257, 20
      %s262 = sadd.s32 %s260, %s261
      %s263 = smul.addr %s262, 4
      %s264 = scalar_lea.vmem %s0, %s263
      %s265 = smul.u32 3, %s21
      %p266 = scmp.lt.s32.totalorder %s20, 1
      %s267 = scalar_select %p266, %s20, 1
      %p268 = scmp.lt.s32.totalorder %s265, 2
      %s269 = scalar_select %p268, %s265, 2
      %s270 = smul.addr %s267, 12
      %s271 = sadd.s32 %s269, %s270
      %s272 = smul.addr %s271, 8
      %s273 = scalar_lea.vmem %s2, %s272
      %s274 = smul.u32 3, %s21
      %s275 = smul.u32 3, %s21
      %p276 = scmp.lt.s32.totalorder %s20, 1
      %s277 = scalar_select %p276, %s20, 1
      %p278 = scmp.lt.s32.totalorder %s275, 2
      %s279 = scalar_select %p278, %s275, 2
      %s280 = smul.addr %s277, 12
      %s281 = sadd.s32 %s279, %s280
      %s282 = smul.addr %s281, 8
      %s283 = scalar_lea.vmem %s3, %s282
      %s284 = smul.u32 3, %s21
      %s285 = smul.u32 3, %s21
      %p286 = scmp.lt.s32.totalorder %s20, 1
      %s287 = scalar_select %p286, %s20, 1
      %p288 = scmp.lt.s32.totalorder %s285, 2
      %s289 = scalar_select %p288, %s285, 2
      %s290 = smul.addr %s287, 12
      %s291 = sadd.s32 %s289, %s290
      %s292 = smul.addr %s291, 8
      %s293 = scalar_lea.vmem %s4, %s292
      %s294 = smul.u32 3, %s21
      %v296 = vld [vmem:[%s264] sm:$0xff]
      %v297 = vld [vmem:[%s264 + $0x8] sm:$0xf]
      %v298 = vld [vmem:[%s264 + $0x10] sm:$0xff]
      %v299 = vld [vmem:[%s264 + $0x18] sm:$0xf]
      %v300 = vld [vmem:[%s264 + $0x20] sm:$0xff]
      %v301 = vld [vmem:[%s264 + $0x28] sm:$0xf]
      %v302 = vld [vmem:[%s264 + $0x30] sm:$0xff]
      %v303 = vld [vmem:[%s264 + $0x38] sm:$0xf]
      %v304 = vld [vmem:[%s264 + $0x40] sm:$0xff]
      %v305 = vld [vmem:[%s264 + $0x48] sm:$0xf]
      %306 = vst [vmem:[#allocation2] sm:$0xff] %v296
      %307 = vst [vmem:[#allocation2 + $0x8] sm:$0xf] %v297
      %308 = vst [vmem:[#allocation2 + $0xc] sm:$0xff] %v298
      %309 = vst [vmem:[#allocation2 + $0x14] sm:$0xf] %v299
      %310 = vst [vmem:[#allocation2 + $0x18] sm:$0xff] %v300
      %311 = vst [vmem:[#allocation2 + $0x20] sm:$0xf] %v301
      %312 = vst [vmem:[#allocation2 + $0x24] sm:$0xff] %v302
      %313 = vst [vmem:[#allocation2 + $0x2c] sm:$0xf] %v303
      %314 = vst [vmem:[#allocation2 + $0x30] sm:$0xff] %v304
      %315 = vst [vmem:[#allocation2 + $0x38] sm:$0xf] %v305
      %v316 = vld [vmem:[%s264] sm:$0xff]
      %v317 = vld [vmem:[%s264 + $0x8] sm:$0xff]
      %v318 = vld [vmem:[%s264 + $0x10] sm:$0xff]
      %v319 = vld [vmem:[%s264 + $0x18] sm:$0xff]
      %v320 = vld [vmem:[%s264 + $0x20] sm:$0xff]
      %v321 = vld [vmem:[%s264 + $0x28] sm:$0xff]
      %v322 = vld [vmem:[%s264 + $0x30] sm:$0xff]
      %v323 = vld [vmem:[%s264 + $0x38] sm:$0xff]
      %v324 = vld [vmem:[%s264 + $0x40] sm:$0xff]
      %v325 = vld [vmem:[%s264 + $0x48] sm:$0xff]
      %336 = vrot.lane.b32.xlu0 %v316, 127
      %v337 = vpop.permute.xlu0 %336
      %338 = vrot.lane.b32.xlu0 %v317, 127
      %v339 = vpop.permute.xlu0 %338
      %340 = vrot.lane.b32.xlu0 %v318, 127
      %v341 = vpop.permute.xlu0 %340
      %342 = vrot.lane.b32.xlu0 %v319, 127
      %v343 = vpop.permute.xlu0 %342
      %344 = vrot.lane.b32.xlu0 %v320, 127
      %v345 = vpop.permute.xlu0 %344
      %346 = vrot.lane.b32.xlu0 %v321, 127
      %v347 = vpop.permute.xlu0 %346
      %348 = vrot.lane.b32.xlu0 %v322, 127
      %v349 = vpop.permute.xlu0 %348
      %350 = vrot.lane.b32.xlu0 %v323, 127
      %v351 = vpop.permute.xlu0 %350
      %352 = vrot.lane.b32.xlu0 %v324, 127
      %v353 = vpop.permute.xlu0 %352
      %354 = vrot.lane.b32.xlu0 %v325, 127
      %v355 = vpop.permute.xlu0 %354
      %v356 = vrot.slane %v337, 4
      %v357 = vrot.slane %v339, 4
      %v358 = vrot.slane %v341, 4
      %v359 = vrot.slane %v343, 4
      %v360 = vrot.slane %v345, 4
      %v361 = vrot.slane %v347, 4
      %v362 = vrot.slane %v349, 4
      %v363 = vrot.slane %v351, 4
      %v364 = vrot.slane %v353, 4
      %v365 = vrot.slane %v355, 4
      %vm366 = vcmask 1043456
      %v367 = vsel %vm366, %v356, %v357
      %vm368 = vcmask 1039360
      %v369 = vsel %vm368, %v337, %v367
      %v370 = vsel %vm368, %v339, %v357
      %v371 = vsel %vm366, %v358, %v359
      %v372 = vsel %vm368, %v341, %v371
      %v373 = vsel %vm368, %v343, %v359
      %v374 = vsel %vm366, %v360, %v361
      %v375 = vsel %vm368, %v345, %v374
      %v376 = vsel %vm368, %v347, %v361
      %v377 = vsel %vm366, %v362, %v363
      %v378 = vsel %vm368, %v349, %v377
      %v379 = vsel %vm368, %v351, %v363
      %v380 = vsel %vm366, %v364, %v365
      %v381 = vsel %vm368, %v353, %v380
      %v382 = vsel %vm368, %v355, %v365
      %393 = vst [vmem:[#allocation2 + $0x3c] sm:$0xff] %v369
      %394 = vst [vmem:[#allocation2 + $0x44] sm:$0xf] %v370
      %395 = vst [vmem:[#allocation2 + $0x48] sm:$0xff] %v372
      %396 = vst [vmem:[#allocation2 + $0x50] sm:$0xf] %v373
      %397 = vst [vmem:[#allocation2 + $0x54] sm:$0xff] %v375
      %398 = vst [vmem:[#allocation2 + $0x5c] sm:$0xf] %v376
      %399 = vst [vmem:[#allocation2 + $0x60] sm:$0xff] %v378
      %400 = vst [vmem:[#allocation2 + $0x68] sm:$0xf] %v379
      %401 = vst [vmem:[#allocation2 + $0x6c] sm:$0xff] %v381
      %402 = vst [vmem:[#allocation2 + $0x74] sm:$0xf] %v382
      %v403 = vld [vmem:[%s264] sm:$0xff]
      %v404 = vld [vmem:[%s264 + $0x8] sm:$0xff]
      %v405 = vld [vmem:[%s264 + $0x10] sm:$0xff]
      %v406 = vld [vmem:[%s264 + $0x18] sm:$0xff]
      %v407 = vld [vmem:[%s264 + $0x20] sm:$0xff]
      %v408 = vld [vmem:[%s264 + $0x28] sm:$0xff]
      %v409 = vld [vmem:[%s264 + $0x30] sm:$0xff]
      %v410 = vld [vmem:[%s264 + $0x38] sm:$0xff]
      %v411 = vld [vmem:[%s264 + $0x40] sm:$0xff]
      %v412 = vld [vmem:[%s264 + $0x48] sm:$0xff]
      %423 = vrot.lane.b32.xlu0 %v403, 126
      %v424 = vpop.permute.xlu0 %423
      %425 = vrot.lane.b32.xlu0 %v404, 126
      %v426 = vpop.permute.xlu0 %425
      %427 = vrot.lane.b32.xlu0 %v405, 126
      %v428 = vpop.permute.xlu0 %427
      %429 = vrot.lane.b32.xlu0 %v406, 126
      %v430 = vpop.permute.xlu0 %429
      %431 = vrot.lane.b32.xlu0 %v407, 126
      %v432 = vpop.permute.xlu0 %431
      %433 = vrot.lane.b32.xlu0 %v408, 126
      %v434 = vpop.permute.xlu0 %433
      %435 = vrot.lane.b32.xlu0 %v409, 126
      %v436 = vpop.permute.xlu0 %435
      %437 = vrot.lane.b32.xlu0 %v410, 126
      %v438 = vpop.permute.xlu0 %437
      %439 = vrot.lane.b32.xlu0 %v411, 126
      %v440 = vpop.permute.xlu0 %439
      %441 = vrot.lane.b32.xlu0 %v412, 126
      %v442 = vpop.permute.xlu0 %441
      %v443 = vrot.slane %v424, 4
      %v444 = vrot.slane %v426, 4
      %v445 = vrot.slane %v428, 4
      %v446 = vrot.slane %v430, 4
      %v447 = vrot.slane %v432, 4
      %v448 = vrot.slane %v434, 4
      %v449 = vrot.slane %v436, 4
      %v450 = vrot.slane %v438, 4
      %v451 = vrot.slane %v440, 4
      %v452 = vrot.slane %v442, 4
      %v453 = vsel %vm366, %v443, %v444
      %vm454 = vcmask 1031168
      %v455 = vsel %vm454, %v424, %v453
      %v456 = vsel %vm454, %v426, %v444
      %v457 = vsel %vm366, %v445, %v446
      %v458 = vsel %vm454, %v428, %v457
      %v459 = vsel %vm454, %v430, %v446
      %v460 = vsel %vm366, %v447, %v448
      %v461 = vsel %vm454, %v432, %v460
      %v462 = vsel %vm454, %v434, %v448
      %v463 = vsel %vm366, %v449, %v450
      %v464 = vsel %vm454, %v436, %v463
      %v465 = vsel %vm454, %v438, %v450
      %v466 = vsel %vm366, %v451, %v452
      %v467 = vsel %vm454, %v440, %v466
      %v468 = vsel %vm454, %v442, %v452
      %479 = vst [vmem:[#allocation2 + $0x78] sm:$0xff] %v455
      %480 = vst [vmem:[#allocation2 + $0x80] sm:$0xf] %v456
      %481 = vst [vmem:[#allocation2 + $0x84] sm:$0xff] %v458
      %482 = vst [vmem:[#allocation2 + $0x8c] sm:$0xf] %v459
      %483 = vst [vmem:[#allocation2 + $0x90] sm:$0xff] %v461
      %484 = vst [vmem:[#allocation2 + $0x98] sm:$0xf] %v462
      %485 = vst [vmem:[#allocation2 + $0x9c] sm:$0xff] %v464
      %486 = vst [vmem:[#allocation2 + $0xa4] sm:$0xf] %v465
      %487 = vst [vmem:[#allocation2 + $0xa8] sm:$0xff] %v467
      %488 = vst [vmem:[#allocation2 + $0xb0] sm:$0xf] %v468
      %v489 = vld [vmem:[%s264] sm:$0xff]
      %v490 = vld [vmem:[%s264 + $0x8] sm:$0xff]
      %v491 = vld [vmem:[%s264 + $0x10] sm:$0xff]
      %v492 = vld [vmem:[%s264 + $0x18] sm:$0xff]
      %v493 = vld [vmem:[%s264 + $0x20] sm:$0xff]
      %v494 = vld [vmem:[%s264 + $0x28] sm:$0xff]
      %v495 = vld [vmem:[%s264 + $0x30] sm:$0xff]
      %v496 = vld [vmem:[%s264 + $0x38] sm:$0xff]
      %v497 = vld [vmem:[%s264 + $0x40] sm:$0xff]
      %v498 = vld [vmem:[%s264 + $0x48] sm:$0xff]
      %509 = vrot.lane.b32.xlu0 %v489, 110
      %v510 = vpop.permute.xlu0 %509
      %511 = vrot.lane.b32.xlu0 %v490, 110
      %v512 = vpop.permute.xlu0 %511
      %513 = vrot.lane.b32.xlu0 %v491, 110
      %v514 = vpop.permute.xlu0 %513
      %515 = vrot.lane.b32.xlu0 %v492, 110
      %v516 = vpop.permute.xlu0 %515
      %517 = vrot.lane.b32.xlu0 %v493, 110
      %v518 = vpop.permute.xlu0 %517
      %519 = vrot.lane.b32.xlu0 %v494, 110
      %v520 = vpop.permute.xlu0 %519
      %521 = vrot.lane.b32.xlu0 %v495, 110
      %v522 = vpop.permute.xlu0 %521
      %523 = vrot.lane.b32.xlu0 %v496, 110
      %v524 = vpop.permute.xlu0 %523
      %525 = vrot.lane.b32.xlu0 %v497, 110
      %v526 = vpop.permute.xlu0 %525
      %527 = vrot.lane.b32.xlu0 %v498, 110
      %v528 = vpop.permute.xlu0 %527
      %v529 = vrot.slane %v510, 4
      %v530 = vrot.slane %v512, 4
      %v531 = vrot.slane %v514, 4
      %v532 = vrot.slane %v516, 4
      %v533 = vrot.slane %v518, 4
      %v534 = vrot.slane %v520, 4
      %v535 = vrot.slane %v522, 4
      %v536 = vrot.slane %v524, 4
      %v537 = vrot.slane %v526, 4
      %v538 = vrot.slane %v528, 4
      %v539 = vsel %vm366, %v529, %v530
      %vm540 = vcmask 900096
      %v541 = vsel %vm540, %v510, %v539
      %v542 = vsel %vm540, %v512, %v530
      %v543 = vsel %vm366, %v531, %v532
      %v544 = vsel %vm540, %v514, %v543
      %v545 = vsel %vm540, %v516, %v532
      %v546 = vsel %vm366, %v533, %v534
      %v547 = vsel %vm540, %v518, %v546
      %v548 = vsel %vm540, %v520, %v534
      %v549 = vsel %vm366, %v535, %v536
      %v550 = vsel %vm540, %v522, %v549
      %v551 = vsel %vm540, %v524, %v536
      %v552 = vsel %vm366, %v537, %v538
      %v553 = vsel %vm540, %v526, %v552
      %v554 = vsel %vm540, %v528, %v538
      %565 = vst [vmem:[#allocation2 + $0xb4] sm:$0xff] %v541
      %566 = vst [vmem:[#allocation2 + $0xbc] sm:$0xf] %v542
      %567 = vst [vmem:[#allocation2 + $0xc0] sm:$0xff] %v544
      %568 = vst [vmem:[#allocation2 + $0xc8] sm:$0xf] %v545
      %569 = vst [vmem:[#allocation2 + $0xcc] sm:$0xff] %v547
      %570 = vst [vmem:[#allocation2 + $0xd4] sm:$0xf] %v548
      %571 = vst [vmem:[#allocation2 + $0xd8] sm:$0xff] %v550
      %572 = vst [vmem:[#allocation2 + $0xe0] sm:$0xf] %v551
      %573 = vst [vmem:[#allocation2 + $0xe4] sm:$0xff] %v553
      %574 = vst [vmem:[#allocation2 + $0xec] sm:$0xf] %v554
      %v575 = vld [vmem:[%s264] sm:$0xff]
      %v576 = vld [vmem:[%s264 + $0x8] sm:$0xff]
      %v577 = vld [vmem:[%s264 + $0x10] sm:$0xff]
      %v578 = vld [vmem:[%s264 + $0x18] sm:$0xff]
      %v579 = vld [vmem:[%s264 + $0x20] sm:$0xff]
      %v580 = vld [vmem:[%s264 + $0x28] sm:$0xff]
      %v581 = vld [vmem:[%s264 + $0x30] sm:$0xff]
      %v582 = vld [vmem:[%s264 + $0x38] sm:$0xff]
      %v583 = vld [vmem:[%s264 + $0x40] sm:$0xff]
      %v584 = vld [vmem:[%s264 + $0x48] sm:$0xff]
      %595 = vrot.lane.b32.xlu0 %v575, 109
      %v596 = vpop.permute.xlu0 %595
      %597 = vrot.lane.b32.xlu0 %v576, 109
      %v598 = vpop.permute.xlu0 %597
      %599 = vrot.lane.b32.xlu0 %v577, 109
      %v600 = vpop.permute.xlu0 %599
      %601 = vrot.lane.b32.xlu0 %v578, 109
      %v602 = vpop.permute.xlu0 %601
      %603 = vrot.lane.b32.xlu0 %v579, 109
      %v604 = vpop.permute.xlu0 %603
      %605 = vrot.lane.b32.xlu0 %v580, 109
      %v606 = vpop.permute.xlu0 %605
      %607 = vrot.lane.b32.xlu0 %v581, 109
      %v608 = vpop.permute.xlu0 %607
      %609 = vrot.lane.b32.xlu0 %v582, 109
      %v610 = vpop.permute.xlu0 %609
      %611 = vrot.lane.b32.xlu0 %v583, 109
      %v612 = vpop.permute.xlu0 %611
      %613 = vrot.lane.b32.xlu0 %v584, 109
      %v614 = vpop.permute.xlu0 %613
      %v615 = vrot.slane %v596, 4
      %v616 = vrot.slane %v598, 4
      %v617 = vrot.slane %v600, 4
      %v618 = vrot.slane %v602, 4
      %v619 = vrot.slane %v604, 4
      %v620 = vrot.slane %v606, 4
      %v621 = vrot.slane %v608, 4
      %v622 = vrot.slane %v610, 4
      %v623 = vrot.slane %v612, 4
      %v624 = vrot.slane %v614, 4
      %v625 = vsel %vm366, %v615, %v616
      %vm626 = vcmask 891904
      %v627 = vsel %vm626, %v596, %v625
      %v628 = vsel %vm626, %v598, %v616
      %v629 = vsel %vm366, %v617, %v618
      %v630 = vsel %vm626, %v600, %v629
      %v631 = vsel %vm626, %v602, %v618
      %v632 = vsel %vm366, %v619, %v620
      %v633 = vsel %vm626, %v604, %v632
      %v634 = vsel %vm626, %v606, %v620
      %v635 = vsel %vm366, %v621, %v622
      %v636 = vsel %vm626, %v608, %v635
      %v637 = vsel %vm626, %v610, %v622
      %v638 = vsel %vm366, %v623, %v624
      %v639 = vsel %vm626, %v612, %v638
      %v640 = vsel %vm626, %v614, %v624
      %651 = vst [vmem:[#allocation2 + $0xf0] sm:$0xff] %v627
      %652 = vst [vmem:[#allocation2 + $0xf8] sm:$0xf] %v628
      %653 = vst [vmem:[#allocation2 + $0xfc] sm:$0xff] %v630
      %654 = vst [vmem:[#allocation2 + $0x104] sm:$0xf] %v631
      %655 = vst [vmem:[#allocation2 + $0x108] sm:$0xff] %v633
      %656 = vst [vmem:[#allocation2 + $0x110] sm:$0xf] %v634
      %657 = vst [vmem:[#allocation2 + $0x114] sm:$0xff] %v636
      %658 = vst [vmem:[#allocation2 + $0x11c] sm:$0xf] %v637
      %659 = vst [vmem:[#allocation2 + $0x120] sm:$0xff] %v639
      %660 = vst [vmem:[#allocation2 + $0x128] sm:$0xf] %v640
      %v661 = vld [vmem:[%s264] sm:$0xff]
      %v662 = vld [vmem:[%s264 + $0x8] sm:$0xff]
      %v663 = vld [vmem:[%s264 + $0x10] sm:$0xff]
      %v664 = vld [vmem:[%s264 + $0x18] sm:$0xff]
      %v665 = vld [vmem:[%s264 + $0x20] sm:$0xff]
      %v666 = vld [vmem:[%s264 + $0x28] sm:$0xff]
      %v667 = vld [vmem:[%s264 + $0x30] sm:$0xff]
      %v668 = vld [vmem:[%s264 + $0x38] sm:$0xff]
      %v669 = vld [vmem:[%s264 + $0x40] sm:$0xff]
      %v670 = vld [vmem:[%s264 + $0x48] sm:$0xff]
      %681 = vrot.lane.b32.xlu0 %v661, 108
      %v682 = vpop.permute.xlu0 %681
      %683 = vrot.lane.b32.xlu0 %v662, 108
      %v684 = vpop.permute.xlu0 %683
      %685 = vrot.lane.b32.xlu0 %v663, 108
      %v686 = vpop.permute.xlu0 %685
      %687 = vrot.lane.b32.xlu0 %v664, 108
      %v688 = vpop.permute.xlu0 %687
      %689 = vrot.lane.b32.xlu0 %v665, 108
      %v690 = vpop.permute.xlu0 %689
      %691 = vrot.lane.b32.xlu0 %v666, 108
      %v692 = vpop.permute.xlu0 %691
      %693 = vrot.lane.b32.xlu0 %v667, 108
      %v694 = vpop.permute.xlu0 %693
      %695 = vrot.lane.b32.xlu0 %v668, 108
      %v696 = vpop.permute.xlu0 %695
      %697 = vrot.lane.b32.xlu0 %v669, 108
      %v698 = vpop.permute.xlu0 %697
      %699 = vrot.lane.b32.xlu0 %v670, 108
      %v700 = vpop.permute.xlu0 %699
      %v701 = vrot.slane %v682, 4
      %v702 = vrot.slane %v684, 4
      %v703 = vrot.slane %v686, 4
      %v704 = vrot.slane %v688, 4
      %v705 = vrot.slane %v690, 4
      %v706 = vrot.slane %v692, 4
      %v707 = vrot.slane %v694, 4
      %v708 = vrot.slane %v696, 4
      %v709 = vrot.slane %v698, 4
      %v710 = vrot.slane %v700, 4
      %v711 = vsel %vm366, %v701, %v702
      %vm712 = vcmask 883712
      %v713 = vsel %vm712, %v682, %v711
      %v714 = vsel %vm712, %v684, %v702
      %v715 = vsel %vm366, %v703, %v704
      %v716 = vsel %vm712, %v686, %v715
      %v717 = vsel %vm712, %v688, %v704
      %v718 = vsel %vm366, %v705, %v706
      %v719 = vsel %vm712, %v690, %v718
      %v720 = vsel %vm712, %v692, %v706
      %v721 = vsel %vm366, %v707, %v708
      %v722 = vsel %vm712, %v694, %v721
      %v723 = vsel %vm712, %v696, %v708
      %v724 = vsel %vm366, %v709, %v710
      %v725 = vsel %vm712, %v698, %v724
      %v726 = vsel %vm712, %v700, %v710
      %737 = vst [vmem:[#allocation2 + $0x12c] sm:$0xff] %v713
      %738 = vst [vmem:[#allocation2 + $0x134] sm:$0xf] %v714
      %739 = vst [vmem:[#allocation2 + $0x138] sm:$0xff] %v716
      %740 = vst [vmem:[#allocation2 + $0x140] sm:$0xf] %v717
      %741 = vst [vmem:[#allocation2 + $0x144] sm:$0xff] %v719
      %742 = vst [vmem:[#allocation2 + $0x14c] sm:$0xf] %v720
      %743 = vst [vmem:[#allocation2 + $0x150] sm:$0xff] %v722
      %744 = vst [vmem:[#allocation2 + $0x158] sm:$0xf] %v723
      %745 = vst [vmem:[#allocation2 + $0x15c] sm:$0xff] %v725
      %746 = vst [vmem:[#allocation2 + $0x164] sm:$0xf] %v726
      %v747 = vld [vmem:[%s264] sm:$0xff]
      %v748 = vld [vmem:[%s264 + $0x8] sm:$0xff]
      %v749 = vld [vmem:[%s264 + $0x10] sm:$0xff]
      %v750 = vld [vmem:[%s264 + $0x18] sm:$0xff]
      %v751 = vld [vmem:[%s264 + $0x20] sm:$0xff]
      %v752 = vld [vmem:[%s264 + $0x28] sm:$0xff]
      %v753 = vld [vmem:[%s264 + $0x30] sm:$0xff]
      %v754 = vld [vmem:[%s264 + $0x38] sm:$0xff]
      %v755 = vld [vmem:[%s264 + $0x40] sm:$0xff]
      %v756 = vld [vmem:[%s264 + $0x48] sm:$0xff]
      %767 = vrot.lane.b32.xlu0 %v747, 92
      %v768 = vpop.permute.xlu0 %767
      %769 = vrot.lane.b32.xlu0 %v748, 92
      %v770 = vpop.permute.xlu0 %769
      %771 = vrot.lane.b32.xlu0 %v749, 92
      %v772 = vpop.permute.xlu0 %771
      %773 = vrot.lane.b32.xlu0 %v750, 92
      %v774 = vpop.permute.xlu0 %773
      %775 = vrot.lane.b32.xlu0 %v751, 92
      %v776 = vpop.permute.xlu0 %775
      %777 = vrot.lane.b32.xlu0 %v752, 92
      %v778 = vpop.permute.xlu0 %777
      %779 = vrot.lane.b32.xlu0 %v753, 92
      %v780 = vpop.permute.xlu0 %779
      %781 = vrot.lane.b32.xlu0 %v754, 92
      %v782 = vpop.permute.xlu0 %781
      %783 = vrot.lane.b32.xlu0 %v755, 92
      %v784 = vpop.permute.xlu0 %783
      %785 = vrot.lane.b32.xlu0 %v756, 92
      %v786 = vpop.permute.xlu0 %785
      %v787 = vrot.slane %v768, 4
      %v788 = vrot.slane %v770, 4
      %v789 = vrot.slane %v772, 4
      %v790 = vrot.slane %v774, 4
      %v791 = vrot.slane %v776, 4
      %v792 = vrot.slane %v778, 4
      %v793 = vrot.slane %v780, 4
      %v794 = vrot.slane %v782, 4
      %v795 = vrot.slane %v784, 4
      %v796 = vrot.slane %v786, 4
      %v797 = vsel %vm366, %v787, %v788
      %vm798 = vcmask 752640
      %v799 = vsel %vm798, %v768, %v797
      %v800 = vsel %vm798, %v770, %v788
      %v801 = vsel %vm366, %v789, %v790
      %v802 = vsel %vm798, %v772, %v801
      %v803 = vsel %vm798, %v774, %v790
      %v804 = vsel %vm366, %v791, %v792
      %v805 = vsel %vm798, %v776, %v804
      %v806 = vsel %vm798, %v778, %v792
      %v807 = vsel %vm366, %v793, %v794
      %v808 = vsel %vm798, %v780, %v807
      %v809 = vsel %vm798, %v782, %v794
      %v810 = vsel %vm366, %v795, %v796
      %v811 = vsel %vm798, %v784, %v810
      %v812 = vsel %vm798, %v786, %v796
      %823 = vst [vmem:[#allocation2 + $0x168] sm:$0xff] %v799
      %824 = vst [vmem:[#allocation2 + $0x170] sm:$0xf] %v800
      %825 = vst [vmem:[#allocation2 + $0x174] sm:$0xff] %v802
      %826 = vst [vmem:[#allocation2 + $0x17c] sm:$0xf] %v803
      %827 = vst [vmem:[#allocation2 + $0x180] sm:$0xff] %v805
      %828 = vst [vmem:[#allocation2 + $0x188] sm:$0xf] %v806
      %829 = vst [vmem:[#allocation2 + $0x18c] sm:$0xff] %v808
      %830 = vst [vmem:[#allocation2 + $0x194] sm:$0xf] %v809
      %831 = vst [vmem:[#allocation2 + $0x198] sm:$0xff] %v811
      %832 = vst [vmem:[#allocation2 + $0x1a0] sm:$0xf] %v812
      %v833 = vld [vmem:[%s264] sm:$0xff]
      %v834 = vld [vmem:[%s264 + $0x8] sm:$0xff]
      %v835 = vld [vmem:[%s264 + $0x10] sm:$0xff]
      %v836 = vld [vmem:[%s264 + $0x18] sm:$0xff]
      %v837 = vld [vmem:[%s264 + $0x20] sm:$0xff]
      %v838 = vld [vmem:[%s264 + $0x28] sm:$0xff]
      %v839 = vld [vmem:[%s264 + $0x30] sm:$0xff]
      %v840 = vld [vmem:[%s264 + $0x38] sm:$0xff]
      %v841 = vld [vmem:[%s264 + $0x40] sm:$0xff]
      %v842 = vld [vmem:[%s264 + $0x48] sm:$0xff]
      %853 = vrot.lane.b32.xlu0 %v833, 91
      %v854 = vpop.permute.xlu0 %853
      %855 = vrot.lane.b32.xlu0 %v834, 91
      %v856 = vpop.permute.xlu0 %855
      %857 = vrot.lane.b32.xlu0 %v835, 91
      %v858 = vpop.permute.xlu0 %857
      %859 = vrot.lane.b32.xlu0 %v836, 91
      %v860 = vpop.permute.xlu0 %859
      %861 = vrot.lane.b32.xlu0 %v837, 91
      %v862 = vpop.permute.xlu0 %861
      %863 = vrot.lane.b32.xlu0 %v838, 91
      %v864 = vpop.permute.xlu0 %863
      %865 = vrot.lane.b32.xlu0 %v839, 91
      %v866 = vpop.permute.xlu0 %865
      %867 = vrot.lane.b32.xlu0 %v840, 91
      %v868 = vpop.permute.xlu0 %867
      %869 = vrot.lane.b32.xlu0 %v841, 91
      %v870 = vpop.permute.xlu0 %869
      %871 = vrot.lane.b32.xlu0 %v842, 91
      %v872 = vpop.permute.xlu0 %871
      %v873 = vrot.slane %v854, 4
      %v874 = vrot.slane %v856, 4
      %v875 = vrot.slane %v858, 4
      %v876 = vrot.slane %v860, 4
      %v877 = vrot.slane %v862, 4
      %v878 = vrot.slane %v864, 4
      %v879 = vrot.slane %v866, 4
      %v880 = vrot.slane %v868, 4
      %v881 = vrot.slane %v870, 4
      %v882 = vrot.slane %v872, 4
      %v883 = vsel %vm366, %v873, %v874
      %vm884 = vcmask 744448
      %v885 = vsel %vm884, %v854, %v883
      %v886 = vsel %vm884, %v856, %v874
      %v887 = vsel %vm366, %v875, %v876
      %v888 = vsel %vm884, %v858, %v887
      %v889 = vsel %vm884, %v860, %v876
      %v890 = vsel %vm366, %v877, %v878
      %v891 = vsel %vm884, %v862, %v890
      %v892 = vsel %vm884, %v864, %v878
      %v893 = vsel %vm366, %v879, %v880
      %v894 = vsel %vm884, %v866, %v893
      %v895 = vsel %vm884, %v868, %v880
      %v896 = vsel %vm366, %v881, %v882
      %v897 = vsel %vm884, %v870, %v896
      %v898 = vsel %vm884, %v872, %v882
      %909 = vst [vmem:[#allocation2 + $0x1a4] sm:$0xff] %v885
      %910 = vst [vmem:[#allocation2 + $0x1ac] sm:$0xf] %v886
      %911 = vst [vmem:[#allocation2 + $0x1b0] sm:$0xff] %v888
      %912 = vst [vmem:[#allocation2 + $0x1b8] sm:$0xf] %v889
      %913 = vst [vmem:[#allocation2 + $0x1bc] sm:$0xff] %v891
      %914 = vst [vmem:[#allocation2 + $0x1c4] sm:$0xf] %v892
      %915 = vst [vmem:[#allocation2 + $0x1c8] sm:$0xff] %v894
      %916 = vst [vmem:[#allocation2 + $0x1d0] sm:$0xf] %v895
      %917 = vst [vmem:[#allocation2 + $0x1d4] sm:$0xff] %v897
      %918 = vst [vmem:[#allocation2 + $0x1dc] sm:$0xf] %v898
      %v919 = vld [vmem:[%s264] sm:$0xff]
      %v920 = vld [vmem:[%s264 + $0x8] sm:$0xff]
      %v921 = vld [vmem:[%s264 + $0x10] sm:$0xff]
      %v922 = vld [vmem:[%s264 + $0x18] sm:$0xff]
      %v923 = vld [vmem:[%s264 + $0x20] sm:$0xff]
      %v924 = vld [vmem:[%s264 + $0x28] sm:$0xff]
      %v925 = vld [vmem:[%s264 + $0x30] sm:$0xff]
      %v926 = vld [vmem:[%s264 + $0x38] sm:$0xff]
      %v927 = vld [vmem:[%s264 + $0x40] sm:$0xff]
      %v928 = vld [vmem:[%s264 + $0x48] sm:$0xff]
      %939 = vrot.lane.b32.xlu0 %v919, 90
      %v940 = vpop.permute.xlu0 %939
      %941 = vrot.lane.b32.xlu0 %v920, 90
      %v942 = vpop.permute.xlu0 %941
      %943 = vrot.lane.b32.xlu0 %v921, 90
      %v944 = vpop.permute.xlu0 %943
      %945 = vrot.lane.b32.xlu0 %v922, 90
      %v946 = vpop.permute.xlu0 %945
      %947 = vrot.lane.b32.xlu0 %v923, 90
      %v948 = vpop.permute.xlu0 %947
      %949 = vrot.lane.b32.xlu0 %v924, 90
      %v950 = vpop.permute.xlu0 %949
      %951 = vrot.lane.b32.xlu0 %v925, 90
      %v952 = vpop.permute.xlu0 %951
      %953 = vrot.lane.b32.xlu0 %v926, 90
      %v954 = vpop.permute.xlu0 %953
      %955 = vrot.lane.b32.xlu0 %v927, 90
      %v956 = vpop.permute.xlu0 %955
      %957 = vrot.lane.b32.xlu0 %v928, 90
      %v958 = vpop.permute.xlu0 %957
      %v959 = vrot.slane %v940, 4
      %v960 = vrot.slane %v942, 4
      %v961 = vrot.slane %v944, 4
      %v962 = vrot.slane %v946, 4
      %v963 = vrot.slane %v948, 4
      %v964 = vrot.slane %v950, 4
      %v965 = vrot.slane %v952, 4
      %v966 = vrot.slane %v954, 4
      %v967 = vrot.slane %v956, 4
      %v968 = vrot.slane %v958, 4
      %v969 = vsel %vm366, %v959, %v960
      %vm970 = vcmask 736256
      %v971 = vsel %vm970, %v940, %v969
      %v972 = vsel %vm970, %v942, %v960
      %v973 = vsel %vm366, %v961, %v962
      %v974 = vsel %vm970, %v944, %v973
      %v975 = vsel %vm970, %v946, %v962
      %v976 = vsel %vm366, %v963, %v964
      %v977 = vsel %vm970, %v948, %v976
      %v978 = vsel %vm970, %v950, %v964
      %v979 = vsel %vm366, %v965, %v966
      %v980 = vsel %vm970, %v952, %v979
      %v981 = vsel %vm970, %v954, %v966
      %v982 = vsel %vm366, %v967, %v968
      %v983 = vsel %vm970, %v956, %v982
      %v984 = vsel %vm970, %v958, %v968
      %995 = vst [vmem:[#allocation2 + $0x1e0] sm:$0xff] %v971
      %996 = vst [vmem:[#allocation2 + $0x1e8] sm:$0xf] %v972
      %997 = vst [vmem:[#allocation2 + $0x1ec] sm:$0xff] %v974
      %998 = vst [vmem:[#allocation2 + $0x1f4] sm:$0xf] %v975
      %999 = vst [vmem:[#allocation2 + $0x1f8] sm:$0xff] %v977
      %1000 = vst [vmem:[#allocation2 + $0x200] sm:$0xf] %v978
      %1001 = vst [vmem:[#allocation2 + $0x204] sm:$0xff] %v980
      %1002 = vst [vmem:[#allocation2 + $0x20c] sm:$0xf] %v981
      %1003 = vst [vmem:[#allocation2 + $0x210] sm:$0xff] %v983
      %1004 = vst [vmem:[#allocation2 + $0x218] sm:$0xf] %v984
      %1005 = vst [vmem:[#allocation2 + $0x21c] sm:$0xff] 1065369472
      %1006 = vst [vmem:[#allocation2 + $0x224] sm:$0xf] 1065369472
      %1007 = vst [vmem:[#allocation2 + $0x228] sm:$0xff] 1065369472
      %1008 = vst [vmem:[#allocation2 + $0x230] sm:$0xf] 1065369472
      %1009 = vst [vmem:[#allocation2 + $0x234] sm:$0xff] 1065369472
      %1010 = vst [vmem:[#allocation2 + $0x23c] sm:$0xf] 1065369472
      %v1011 = vld [vmem:[%s1] sm:$0xff]
      %v1012 = vld [vmem:[%s1 + $0x8] sm:$0xf]
      %v1013 = vld [vmem:[%s1 + $0xc] sm:$0xff]
      %v1014 = vld [vmem:[%s1 + $0x14] sm:$0xf]
      %v1015 = vld [vmem:[%s1 + $0x18] sm:$0xff]
      %v1016 = vld [vmem:[%s1 + $0x20] sm:$0xf]
      %v1017 = vld [vmem:[%s1 + $0x24] sm:$0xff]
      %v1018 = vld [vmem:[%s1 + $0x2c] sm:$0xf]
      %v1019 = vld [vmem:[%s1 + $0x30] sm:$0xff]
      %v1020 = vld [vmem:[%s1 + $0x38] sm:$0xf]
      %v1021 = vld [vmem:[%s1 + $0x3c] sm:$0xff]
      %v1022 = vld [vmem:[%s1 + $0x44] sm:$0xf]
      %v1023 = vld [vmem:[%s1 + $0x48] sm:$0xff]
      %v1024 = vld [vmem:[%s1 + $0x50] sm:$0xf]
      %v1025 = vld [vmem:[%s1 + $0x54] sm:$0xff]
      %v1026 = vld [vmem:[%s1 + $0x5c] sm:$0xf]
      %v1027 = vld [vmem:[%s1 + $0x60] sm:$0xff]
      %v1028 = vld [vmem:[%s1 + $0x68] sm:$0xf]
      %v1029 = vld [vmem:[%s1 + $0x6c] sm:$0xff]
      %v1030 = vld [vmem:[%s1 + $0x74] sm:$0xf]
      %v1031 = vld [vmem:[%s1 + $0x78] sm:$0xff]
      %v1032 = vld [vmem:[%s1 + $0x80] sm:$0xf]
      %v1033 = vld [vmem:[%s1 + $0x84] sm:$0xff]
      %v1034 = vld [vmem:[%s1 + $0x8c] sm:$0xf]
      %v1035 = vld [vmem:[%s1 + $0x90] sm:$0xff]
      %v1036 = vld [vmem:[%s1 + $0x98] sm:$0xf]
      %v1037 = vld [vmem:[%s1 + $0x9c] sm:$0xff]
      %v1038 = vld [vmem:[%s1 + $0xa4] sm:$0xf]
      %v1039 = vld [vmem:[%s1 + $0xa8] sm:$0xff]
      %v1040 = vld [vmem:[%s1 + $0xb0] sm:$0xf]
      %v1041 = vld [vmem:[%s1 + $0xb4] sm:$0xff]
      %v1042 = vld [vmem:[%s1 + $0xbc] sm:$0xf]
      %v1043 = vld [vmem:[#allocation2] sm:$0xff]
      %v1044 = vld [vmem:[#allocation2 + $0x8] sm:$0xf]
      %v1045 = vld [vmem:[#allocation2 + $0xc] sm:$0xff]
      %v1046 = vld [vmem:[#allocation2 + $0x14] sm:$0xf]
      %v1047 = vld [vmem:[#allocation2 + $0x18] sm:$0xff]
      %v1048 = vld [vmem:[#allocation2 + $0x20] sm:$0xf]
      %v1049 = vld [vmem:[#allocation2 + $0x24] sm:$0xff]
      %v1050 = vld [vmem:[#allocation2 + $0x2c] sm:$0xf]
      %v1051 = vld [vmem:[#allocation2 + $0x30] sm:$0xff]
      %v1052 = vld [vmem:[#allocation2 + $0x38] sm:$0xf]
      %v1053 = vld [vmem:[#allocation2 + $0x3c] sm:$0xff]
      %v1054 = vld [vmem:[#allocation2 + $0x44] sm:$0xf]
      %v1055 = vld [vmem:[#allocation2 + $0x48] sm:$0xff]
      %v1056 = vld [vmem:[#allocation2 + $0x50] sm:$0xf]
      %v1057 = vld [vmem:[#allocation2 + $0x54] sm:$0xff]
      %v1058 = vld [vmem:[#allocation2 + $0x5c] sm:$0xf]
      %v1059 = vld [vmem:[#allocation2 + $0x60] sm:$0xff]
      %v1060 = vld [vmem:[#allocation2 + $0x68] sm:$0xf]
      %v1061 = vld [vmem:[#allocation2 + $0x6c] sm:$0xff]
      %v1062 = vld [vmem:[#allocation2 + $0x74] sm:$0xf]
      %v1063 = vld [vmem:[#allocation2 + $0x78] sm:$0xff]
      %v1064 = vld [vmem:[#allocation2 + $0x80] sm:$0xf]
      %v1065 = vld [vmem:[#allocation2 + $0x84] sm:$0xff]
      %v1066 = vld [vmem:[#allocation2 + $0x8c] sm:$0xf]
      %v1067 = vld [vmem:[#allocation2 + $0x90] sm:$0xff]
      %v1068 = vld [vmem:[#allocation2 + $0x98] sm:$0xf]
      %v1069 = vld [vmem:[#allocation2 + $0x9c] sm:$0xff]
      %v1070 = vld [vmem:[#allocation2 + $0xa4] sm:$0xf]
      %v1071 = vld [vmem:[#allocation2 + $0xa8] sm:$0xff]
      %v1072 = vld [vmem:[#allocation2 + $0xb0] sm:$0xf]
      %v1073 = vld [vmem:[#allocation2 + $0xb4] sm:$0xff]
      %v1074 = vld [vmem:[#allocation2 + $0xbc] sm:$0xf]
      %v1075 = vld [vmem:[#allocation2 + $0xc0] sm:$0xff]
      %v1076 = vld [vmem:[#allocation2 + $0xc8] sm:$0xf]
      %v1077 = vld [vmem:[#allocation2 + $0xcc] sm:$0xff]
      %v1078 = vld [vmem:[#allocation2 + $0xd4] sm:$0xf]
      %v1079 = vld [vmem:[#allocation2 + $0xd8] sm:$0xff]
      %v1080 = vld [vmem:[#allocation2 + $0xe0] sm:$0xf]
      %v1081 = vld [vmem:[#allocation2 + $0xe4] sm:$0xff]
      %v1082 = vld [vmem:[#allocation2 + $0xec] sm:$0xf]
      %v1083 = vld [vmem:[#allocation2 + $0xf0] sm:$0xff]
      %v1084 = vld [vmem:[#allocation2 + $0xf8] sm:$0xf]
      %v1085 = vld [vmem:[#allocation2 + $0xfc] sm:$0xff]
      %v1086 = vld [vmem:[#allocation2 + $0x104] sm:$0xf]
      %v1087 = vld [vmem:[#allocation2 + $0x108] sm:$0xff]
      %v1088 = vld [vmem:[#allocation2 + $0x110] sm:$0xf]
      %v1089 = vld [vmem:[#allocation2 + $0x114] sm:$0xff]
      %v1090 = vld [vmem:[#allocation2 + $0x11c] sm:$0xf]
      %v1091 = vld [vmem:[#allocation2 + $0x120] sm:$0xff]
      %v1092 = vld [vmem:[#allocation2 + $0x128] sm:$0xf]
      %v1093 = vld [vmem:[#allocation2 + $0x12c] sm:$0xff]
      %v1094 = vld [vmem:[#allocation2 + $0x134] sm:$0xf]
      %v1095 = vld [vmem:[#allocation2 + $0x138] sm:$0xff]
      %v1096 = vld [vmem:[#allocation2 + $0x140] sm:$0xf]
      %v1097 = vld [vmem:[#allocation2 + $0x144] sm:$0xff]
      %v1098 = vld [vmem:[#allocation2 + $0x14c] sm:$0xf]
      %v1099 = vld [vmem:[#allocation2 + $0x150] sm:$0xff]
      %v1100 = vld [vmem:[#allocation2 + $0x158] sm:$0xf]
      %v1101 = vld [vmem:[#allocation2 + $0x15c] sm:$0xff]
      %v1102 = vld [vmem:[#allocation2 + $0x164] sm:$0xf]
      %v1103 = vld [vmem:[#allocation2 + $0x168] sm:$0xff]
      %v1104 = vld [vmem:[#allocation2 + $0x170] sm:$0xf]
      %v1105 = vld [vmem:[#allocation2 + $0x174] sm:$0xff]
      %v1106 = vld [vmem:[#allocation2 + $0x17c] sm:$0xf]
      %v1107 = vld [vmem:[#allocation2 + $0x180] sm:$0xff]
      %v1108 = vld [vmem:[#allocation2 + $0x188] sm:$0xf]
      %v1109 = vld [vmem:[#allocation2 + $0x18c] sm:$0xff]
      %v1110 = vld [vmem:[#allocation2 + $0x194] sm:$0xf]
      %v1111 = vld [vmem:[#allocation2 + $0x198] sm:$0xff]
      %v1112 = vld [vmem:[#allocation2 + $0x1a0] sm:$0xf]
      %v1113 = vld [vmem:[#allocation2 + $0x1a4] sm:$0xff]
      %v1114 = vld [vmem:[#allocation2 + $0x1ac] sm:$0xf]
      %v1115 = vld [vmem:[#allocation2 + $0x1b0] sm:$0xff]
      %v1116 = vld [vmem:[#allocation2 + $0x1b8] sm:$0xf]
      %v1117 = vld [vmem:[#allocation2 + $0x1bc] sm:$0xff]
      %v1118 = vld [vmem:[#allocation2 + $0x1c4] sm:$0xf]
      %v1119 = vld [vmem:[#allocation2 + $0x1c8] sm:$0xff]
      %v1120 = vld [vmem:[#allocation2 + $0x1d0] sm:$0xf]
      %v1121 = vld [vmem:[#allocation2 + $0x1d4] sm:$0xff]
      %v1122 = vld [vmem:[#allocation2 + $0x1dc] sm:$0xf]
      %v1123 = vld [vmem:[#allocation2 + $0x1e0] sm:$0xff]
      %v1124 = vld [vmem:[#allocation2 + $0x1e8] sm:$0xf]
      %v1125 = vld [vmem:[#allocation2 + $0x1ec] sm:$0xff]
      %v1126 = vld [vmem:[#allocation2 + $0x1f4] sm:$0xf]
      %v1127 = vld [vmem:[#allocation2 + $0x1f8] sm:$0xff]
      %v1128 = vld [vmem:[#allocation2 + $0x200] sm:$0xf]
      %v1129 = vld [vmem:[#allocation2 + $0x204] sm:$0xff]
      %v1130 = vld [vmem:[#allocation2 + $0x20c] sm:$0xf]
      %v1131 = vld [vmem:[#allocation2 + $0x210] sm:$0xff]
      %v1132 = vld [vmem:[#allocation2 + $0x218] sm:$0xf]
      %v1133 = vld [vmem:[#allocation2 + $0x21c] sm:$0xff]
      %v1134 = vld [vmem:[#allocation2 + $0x224] sm:$0xf]
      %v1135 = vld [vmem:[#allocation2 + $0x228] sm:$0xff]
      %v1136 = vld [vmem:[#allocation2 + $0x230] sm:$0xf]
      %v1137 = vld [vmem:[#allocation2 + $0x234] sm:$0xff]
      %v1138 = vld [vmem:[#allocation2 + $0x23c] sm:$0xf]
      %v1171 = vunpack.c.l.b16 %v1011
      %v1172 = vunpack.c.h.b16 %v1011
      %v1173 = vunpack.c.l.b16 %v1012
      %v1174 = vunpack.c.l.b16 %v1013
      %v1175 = vunpack.c.h.b16 %v1013
      %v1176 = vunpack.c.l.b16 %v1014
      %v1177 = vunpack.c.l.b16 %v1015
      %v1178 = vunpack.c.h.b16 %v1015
      %v1179 = vunpack.c.l.b16 %v1016
      %v1180 = vunpack.c.l.b16 %v1017
      %v1181 = vunpack.c.h.b16 %v1017
      %v1182 = vunpack.c.l.b16 %v1018
      %v1183 = vunpack.c.l.b16 %v1019
      %v1184 = vunpack.c.h.b16 %v1019
      %v1185 = vunpack.c.l.b16 %v1020
      %v1186 = vunpack.c.l.b16 %v1021
      %v1187 = vunpack.c.h.b16 %v1021
      %v1188 = vunpack.c.l.b16 %v1022
      %v1189 = vunpack.c.l.b16 %v1023
      %v1190 = vunpack.c.h.b16 %v1023
      %v1191 = vunpack.c.l.b16 %v1024
      %v1192 = vunpack.c.l.b16 %v1025
      %v1193 = vunpack.c.h.b16 %v1025
      %v1194 = vunpack.c.l.b16 %v1026
      %v1195 = vunpack.c.l.b16 %v1027
      %v1196 = vunpack.c.h.b16 %v1027
      %v1197 = vunpack.c.l.b16 %v1028
      %v1198 = vunpack.c.l.b16 %v1029
      %v1199 = vunpack.c.h.b16 %v1029
      %v1200 = vunpack.c.l.b16 %v1030
      %v1201 = vunpack.c.l.b16 %v1031
      %v1202 = vunpack.c.h.b16 %v1031
      %v1203 = vunpack.c.l.b16 %v1032
      %v1204 = vunpack.c.l.b16 %v1033
      %v1205 = vunpack.c.h.b16 %v1033
      %v1206 = vunpack.c.l.b16 %v1034
      %v1207 = vunpack.c.l.b16 %v1035
      %v1208 = vunpack.c.h.b16 %v1035
      %v1209 = vunpack.c.l.b16 %v1036
      %v1210 = vunpack.c.l.b16 %v1037
      %v1211 = vunpack.c.h.b16 %v1037
      %v1212 = vunpack.c.l.b16 %v1038
      %v1213 = vunpack.c.l.b16 %v1039
      %v1214 = vunpack.c.h.b16 %v1039
      %v1215 = vunpack.c.l.b16 %v1040
      %v1216 = vunpack.c.l.b16 %v1041
      %v1217 = vunpack.c.h.b16 %v1041
      %v1218 = vunpack.c.l.b16 %v1042
      %v1219 = vpack.c.b16 %v1174, %v1171
      %v1220 = vpack.c.b16 %v1175, %v1172
      %v1221 = vpack.c.b16 %v1176, %v1173
      %v1222 = vpack.c.b16 %v1180, %v1177
      %v1223 = vpack.c.b16 %v1181, %v1178
      %v1224 = vpack.c.b16 %v1182, %v1179
      %v1225 = vpack.c.b16 %v1186, %v1183
      %v1226 = vpack.c.b16 %v1187, %v1184
      %v1227 = vpack.c.b16 %v1188, %v1185
      %v1228 = vpack.c.b16 %v1192, %v1189
      %v1229 = vpack.c.b16 %v1193, %v1190
      %v1230 = vpack.c.b16 %v1194, %v1191
      %v1231 = vpack.c.b16 %v1198, %v1195
      %v1232 = vpack.c.b16 %v1199, %v1196
      %v1233 = vpack.c.b16 %v1200, %v1197
      %v1234 = vpack.c.b16 %v1204, %v1201
      %v1235 = vpack.c.b16 %v1205, %v1202
      %v1236 = vpack.c.b16 %v1206, %v1203
      %v1237 = vpack.c.b16 %v1210, %v1207
      %v1238 = vpack.c.b16 %v1211, %v1208
      %v1239 = vpack.c.b16 %v1212, %v1209
      %v1240 = vpack.c.b16 %v1216, %v1213
      %v1241 = vpack.c.b16 %v1217, %v1214
      %v1242 = vpack.c.b16 %v1218, %v1215
      %v1363 = vunpack.c.l.b16 %v1043
      %v1364 = vunpack.c.h.b16 %v1043
      %v1365 = vunpack.c.l.b16 %v1044
      %v1366 = vunpack.c.l.b16 %v1045
      %v1367 = vunpack.c.h.b16 %v1045
      %v1368 = vunpack.c.l.b16 %v1046
      %v1369 = vunpack.c.l.b16 %v1047
      %v1370 = vunpack.c.h.b16 %v1047
      %v1371 = vunpack.c.l.b16 %v1048
      %v1372 = vunpack.c.l.b16 %v1049
      %v1373 = vunpack.c.h.b16 %v1049
      %v1374 = vunpack.c.l.b16 %v1050
      %v1375 = vunpack.c.l.b16 %v1051
      %v1376 = vunpack.c.h.b16 %v1051
      %v1377 = vunpack.c.l.b16 %v1052
      %v1378 = vunpack.c.l.b16 %v1053
      %v1379 = vunpack.c.h.b16 %v1053
      %v1380 = vunpack.c.l.b16 %v1054
      %v1381 = vunpack.c.l.b16 %v1055
      %v1382 = vunpack.c.h.b16 %v1055
      %v1383 = vunpack.c.l.b16 %v1056
      %v1384 = vunpack.c.l.b16 %v1057
      %v1385 = vunpack.c.h.b16 %v1057
      %v1386 = vunpack.c.l.b16 %v1058
      %v1387 = vunpack.c.l.b16 %v1059
      %v1388 = vunpack.c.h.b16 %v1059
      %v1389 = vunpack.c.l.b16 %v1060
      %v1390 = vunpack.c.l.b16 %v1061
      %v1391 = vunpack.c.h.b16 %v1061
      %v1392 = vunpack.c.l.b16 %v1062
      %v1393 = vunpack.c.l.b16 %v1063
      %v1394 = vunpack.c.h.b16 %v1063
      %v1395 = vunpack.c.l.b16 %v1064
      %v1396 = vunpack.c.l.b16 %v1065
      %v1397 = vunpack.c.h.b16 %v1065
      %v1398 = vunpack.c.l.b16 %v1066
      %v1399 = vunpack.c.l.b16 %v1067
      %v1400 = vunpack.c.h.b16 %v1067
      %v1401 = vunpack.c.l.b16 %v1068
      %v1402 = vunpack.c.l.b16 %v1069
      %v1403 = vunpack.c.h.b16 %v1069
      %v1404 = vunpack.c.l.b16 %v1070
      %v1405 = vunpack.c.l.b16 %v1071
      %v1406 = vunpack.c.h.b16 %v1071
      %v1407 = vunpack.c.l.b16 %v1072
      %v1408 = vunpack.c.l.b16 %v1073
      %v1409 = vunpack.c.h.b16 %v1073
      %v1410 = vunpack.c.l.b16 %v1074
      %v1411 = vunpack.c.l.b16 %v1075
      %v1412 = vunpack.c.h.b16 %v1075
      %v1413 = vunpack.c.l.b16 %v1076
      %v1414 = vunpack.c.l.b16 %v1077
      %v1415 = vunpack.c.h.b16 %v1077
      %v1416 = vunpack.c.l.b16 %v1078
      %v1417 = vunpack.c.l.b16 %v1079
      %v1418 = vunpack.c.h.b16 %v1079
      %v1419 = vunpack.c.l.b16 %v1080
      %v1420 = vunpack.c.l.b16 %v1081
      %v1421 = vunpack.c.h.b16 %v1081
      %v1422 = vunpack.c.l.b16 %v1082
      %v1423 = vunpack.c.l.b16 %v1083
      %v1424 = vunpack.c.h.b16 %v1083
      %v1425 = vunpack.c.l.b16 %v1084
      %v1426 = vunpack.c.l.b16 %v1085
      %v1427 = vunpack.c.h.b16 %v1085
      %v1428 = vunpack.c.l.b16 %v1086
      %v1429 = vunpack.c.l.b16 %v1087
      %v1430 = vunpack.c.h.b16 %v1087
      %v1431 = vunpack.c.l.b16 %v1088
      %v1432 = vunpack.c.l.b16 %v1089
      %v1433 = vunpack.c.h.b16 %v1089
      %v1434 = vunpack.c.l.b16 %v1090
      %v1435 = vunpack.c.l.b16 %v1091
      %v1436 = vunpack.c.h.b16 %v1091
      %v1437 = vunpack.c.l.b16 %v1092
      %v1438 = vunpack.c.l.b16 %v1093
      %v1439 = vunpack.c.h.b16 %v1093
      %v1440 = vunpack.c.l.b16 %v1094
      %v1441 = vunpack.c.l.b16 %v1095
      %v1442 = vunpack.c.h.b16 %v1095
      %v1443 = vunpack.c.l.b16 %v1096
      %v1444 = vunpack.c.l.b16 %v1097
      %v1445 = vunpack.c.h.b16 %v1097
      %v1446 = vunpack.c.l.b16 %v1098
      %v1447 = vunpack.c.l.b16 %v1099
      %v1448 = vunpack.c.h.b16 %v1099
      %v1449 = vunpack.c.l.b16 %v1100
      %v1450 = vunpack.c.l.b16 %v1101
      %v1451 = vunpack.c.h.b16 %v1101
      %v1452 = vunpack.c.l.b16 %v1102
      %v1453 = vunpack.c.l.b16 %v1103
      %v1454 = vunpack.c.h.b16 %v1103
      %v1455 = vunpack.c.l.b16 %v1104
      %v1456 = vunpack.c.l.b16 %v1105
      %v1457 = vunpack.c.h.b16 %v1105
      %v1458 = vunpack.c.l.b16 %v1106
      %v1459 = vunpack.c.l.b16 %v1107
      %v1460 = vunpack.c.h.b16 %v1107
      %v1461 = vunpack.c.l.b16 %v1108
      %v1462 = vunpack.c.l.b16 %v1109
      %v1463 = vunpack.c.h.b16 %v1109
      %v1464 = vunpack.c.l.b16 %v1110
      %v1465 = vunpack.c.l.b16 %v1111
      %v1466 = vunpack.c.h.b16 %v1111
      %v1467 = vunpack.c.l.b16 %v1112
      %v1468 = vunpack.c.l.b16 %v1113
      %v1469 = vunpack.c.h.b16 %v1113
      %v1470 = vunpack.c.l.b16 %v1114
      %v1471 = vunpack.c.l.b16 %v1115
      %v1472 = vunpack.c.h.b16 %v1115
      %v1473 = vunpack.c.l.b16 %v1116
      %v1474 = vunpack.c.l.b16 %v1117
      %v1475 = vunpack.c.h.b16 %v1117
      %v1476 = vunpack.c.l.b16 %v1118
      %v1477 = vunpack.c.l.b16 %v1119
      %v1478 = vunpack.c.h.b16 %v1119
      %v1479 = vunpack.c.l.b16 %v1120
      %v1480 = vunpack.c.l.b16 %v1121
      %v1481 = vunpack.c.h.b16 %v1121
      %v1482 = vunpack.c.l.b16 %v1122
      %v1483 = vunpack.c.l.b16 %v1123
      %v1484 = vunpack.c.h.b16 %v1123
      %v1485 = vunpack.c.l.b16 %v1124
      %v1486 = vunpack.c.l.b16 %v1125
      %v1487 = vunpack.c.h.b16 %v1125
      %v1488 = vunpack.c.l.b16 %v1126
      %v1489 = vunpack.c.l.b16 %v1127
      %v1490 = vunpack.c.h.b16 %v1127
      %v1491 = vunpack.c.l.b16 %v1128
      %v1492 = vunpack.c.l.b16 %v1129
      %v1493 = vunpack.c.h.b16 %v1129
      %v1494 = vunpack.c.l.b16 %v1130
      %v1495 = vunpack.c.l.b16 %v1131
      %v1496 = vunpack.c.h.b16 %v1131
      %v1497 = vunpack.c.l.b16 %v1132
      %v1498 = vunpack.c.l.b16 %v1133
      %v1499 = vunpack.c.h.b16 %v1133
      %v1500 = vunpack.c.l.b16 %v1134
      %v1501 = vunpack.c.l.b16 %v1135
      %v1502 = vunpack.c.h.b16 %v1135
      %v1503 = vunpack.c.l.b16 %v1136
      %v1504 = vunpack.c.l.b16 %v1137
      %v1505 = vunpack.c.h.b16 %v1137
      %v1506 = vunpack.c.l.b16 %v1138
      %v1507 = vpack.c.b16 %v1366, %v1363
      %v1508 = vpack.c.b16 %v1367, %v1364
      %v1509 = vpack.c.b16 %v1368, %v1365
      %v1510 = vpack.c.b16 %v1372, %v1369
      %v1511 = vpack.c.b16 %v1373, %v1370
      %v1512 = vpack.c.b16 %v1374, %v1371
      %v1513 = vpack.c.b16 %v1378, %v1375
      %v1514 = vpack.c.b16 %v1379, %v1376
      %v1515 = vpack.c.b16 %v1380, %v1377
      %v1516 = vpack.c.b16 %v1384, %v1381
      %v1517 = vpack.c.b16 %v1385, %v1382
      %v1518 = vpack.c.b16 %v1386, %v1383
      %v1519 = vpack.c.b16 %v1390, %v1387
      %v1520 = vpack.c.b16 %v1391, %v1388
      %v1521 = vpack.c.b16 %v1392, %v1389
      %v1522 = vpack.c.b16 %v1396, %v1393
      %v1523 = vpack.c.b16 %v1397, %v1394
      %v1524 = vpack.c.b16 %v1398, %v1395
      %v1525 = vpack.c.b16 %v1402, %v1399
      %v1526 = vpack.c.b16 %v1403, %v1400
      %v1527 = vpack.c.b16 %v1404, %v1401
      %v1528 = vpack.c.b16 %v1408, %v1405
      %v1529 = vpack.c.b16 %v1409, %v1406
      %v1530 = vpack.c.b16 %v1410, %v1407
      %v1531 = vpack.c.b16 %v1414, %v1411
      %v1532 = vpack.c.b16 %v1415, %v1412
      %v1533 = vpack.c.b16 %v1416, %v1413
      %v1534 = vpack.c.b16 %v1420, %v1417
      %v1535 = vpack.c.b16 %v1421, %v1418
      %v1536 = vpack.c.b16 %v1422, %v1419
      %v1537 = vpack.c.b16 %v1426, %v1423
      %v1538 = vpack.c.b16 %v1427, %v1424
      %v1539 = vpack.c.b16 %v1428, %v1425
      %v1540 = vpack.c.b16 %v1432, %v1429
      %v1541 = vpack.c.b16 %v1433, %v1430
      %v1542 = vpack.c.b16 %v1434, %v1431
      %v1543 = vpack.c.b16 %v1438, %v1435
      %v1544 = vpack.c.b16 %v1439, %v1436
      %v1545 = vpack.c.b16 %v1440, %v1437
      %v1546 = vpack.c.b16 %v1444, %v1441
      %v1547 = vpack.c.b16 %v1445, %v1442
      %v1548 = vpack.c.b16 %v1446, %v1443
      %v1549 = vpack.c.b16 %v1450, %v1447
      %v1550 = vpack.c.b16 %v1451, %v1448
      %v1551 = vpack.c.b16 %v1452, %v1449
      %v1552 = vpack.c.b16 %v1456, %v1453
      %v1553 = vpack.c.b16 %v1457, %v1454
      %v1554 = vpack.c.b16 %v1458, %v1455
      %v1555 = vpack.c.b16 %v1462, %v1459
      %v1556 = vpack.c.b16 %v1463, %v1460
      %v1557 = vpack.c.b16 %v1464, %v1461
      %v1558 = vpack.c.b16 %v1468, %v1465
      %v1559 = vpack.c.b16 %v1469, %v1466
      %v1560 = vpack.c.b16 %v1470, %v1467
      %v1561 = vpack.c.b16 %v1474, %v1471
      %v1562 = vpack.c.b16 %v1475, %v1472
      %v1563 = vpack.c.b16 %v1476, %v1473
      %v1564 = vpack.c.b16 %v1480, %v1477
      %v1565 = vpack.c.b16 %v1481, %v1478
      %v1566 = vpack.c.b16 %v1482, %v1479
      %v1567 = vpack.c.b16 %v1486, %v1483
      %v1568 = vpack.c.b16 %v1487, %v1484
      %v1569 = vpack.c.b16 %v1488, %v1485
      %v1570 = vpack.c.b16 %v1492, %v1489
      %v1571 = vpack.c.b16 %v1493, %v1490
      %v1572 = vpack.c.b16 %v1494, %v1491
      %v1573 = vpack.c.b16 %v1498, %v1495
      %v1574 = vpack.c.b16 %v1499, %v1496
      %v1575 = vpack.c.b16 %v1500, %v1497
      %v1576 = vpack.c.b16 %v1504, %v1501
      %v1577 = vpack.c.b16 %v1505, %v1502
      %v1578 = vpack.c.b16 %v1506, %v1503
      %1651 = vmatpush.bf16.msra.mxu0 %v1528
      %1652 = vmatpush.bf16.msra.mxu0 %v1525
      %1653 = vmatpush.bf16.msra.mxu0 %v1522
      %1654 = vmatpush.bf16.msra.mxu0 %v1519
      %1655 = vmatpush.bf16.msra.mxu0 %v1516
      %1656 = vmatpush.bf16.msra.mxu0 %v1513
      %1657 = vmatpush.bf16.msra.mxu0 %v1510
      %1658 = vmatpush.bf16.msra.mxu0 %v1507
      %1659 = vmatmul.bf16.gmra.mxu0 %v1219
      %v1660 = vpop.f32.mrf.mxu0
      %v1661 = vadd.f32 0.0, %v1660
      %v1662 = vpop.f32.mrf.mxu0
      %v1663 = vadd.f32 0.0, %v1662
      %1664 = vmatmul.bf16.gmra.mxu0 %v1222
      %v1665 = vpop.f32.mrf.mxu0
      %v1666 = vadd.f32 0.0, %v1665
      %v1667 = vpop.f32.mrf.mxu0
      %v1668 = vadd.f32 0.0, %v1667
      %1669 = vmatmul.bf16.gmra.mxu0 %v1225
      %v1670 = vpop.f32.mrf.mxu0
      %v1671 = vadd.f32 0.0, %v1670
      %v1672 = vpop.f32.mrf.mxu0
      %v1673 = vadd.f32 0.0, %v1672
      %1674 = vmatmul.bf16.gmra.mxu0 %v1228
      %v1675 = vpop.f32.mrf.mxu0
      %v1676 = vadd.f32 0.0, %v1675
      %v1677 = vpop.f32.mrf.mxu0
      %v1678 = vadd.f32 0.0, %v1677
      %1679 = vmatmul.bf16.gmra.mxu0 %v1231
      %v1680 = vpop.f32.mrf.mxu0
      %v1681 = vadd.f32 0.0, %v1680
      %v1682 = vpop.f32.mrf.mxu0
      %v1683 = vadd.f32 0.0, %v1682
      %1684 = vmatmul.bf16.gmra.mxu0 %v1234
      %v1685 = vpop.f32.mrf.mxu0
      %v1686 = vadd.f32 0.0, %v1685
      %v1687 = vpop.f32.mrf.mxu0
      %v1688 = vadd.f32 0.0, %v1687
      %1689 = vmatmul.bf16.gmra.mxu0 %v1237
      %v1690 = vpop.f32.mrf.mxu0
      %v1691 = vadd.f32 0.0, %v1690
      %v1692 = vpop.f32.mrf.mxu0
      %v1693 = vadd.f32 0.0, %v1692
      %1694 = vmatmul.bf16.gmra.mxu0 %v1240
      %v1695 = vpop.f32.mrf.mxu0
      %v1696 = vadd.f32 0.0, %v1695
      %v1697 = vpop.f32.mrf.mxu0
      %v1698 = vadd.f32 0.0, %v1697
      %1699 = vdwg.mxu0
      %1700 = vmatpush.bf16.msra.mxu0 %v1552
      %1701 = vmatpush.bf16.msra.mxu0 %v1549
      %1702 = vmatpush.bf16.msra.mxu0 %v1546
      %1703 = vmatpush.bf16.msra.mxu0 %v1543
      %1704 = vmatpush.bf16.msra.mxu0 %v1540
      %1705 = vmatpush.bf16.msra.mxu0 %v1537
      %1706 = vmatpush.bf16.msra.mxu0 %v1534
      %1707 = vmatpush.bf16.msra.mxu0 %v1531
      %1708 = vmatmul.bf16.gmra.mxu0 %v1220
      %v1709 = vpop.f32.mrf.mxu0
      %v1710 = vadd.f32 %v1661, %v1709
      %v1711 = vpop.f32.mrf.mxu0
      %v1712 = vadd.f32 %v1663, %v1711
      %1713 = vmatmul.bf16.gmra.mxu0 %v1223
      %v1714 = vpop.f32.mrf.mxu0
      %v1715 = vadd.f32 %v1666, %v1714
      %v1716 = vpop.f32.mrf.mxu0
      %v1717 = vadd.f32 %v1668, %v1716
      %1718 = vmatmul.bf16.gmra.mxu0 %v1226
      %v1719 = vpop.f32.mrf.mxu0
      %v1720 = vadd.f32 %v1671, %v1719
      %v1721 = vpop.f32.mrf.mxu0
      %v1722 = vadd.f32 %v1673, %v1721
      %1723 = vmatmul.bf16.gmra.mxu0 %v1229
      %v1724 = vpop.f32.mrf.mxu0
      %v1725 = vadd.f32 %v1676, %v1724
      %v1726 = vpop.f32.mrf.mxu0
      %v1727 = vadd.f32 %v1678, %v1726
      %1728 = vmatmul.bf16.gmra.mxu0 %v1232
      %v1729 = vpop.f32.mrf.mxu0
      %v1730 = vadd.f32 %v1681, %v1729
      %v1731 = vpop.f32.mrf.mxu0
      %v1732 = vadd.f32 %v1683, %v1731
      %1733 = vmatmul.bf16.gmra.mxu0 %v1235
      %v1734 = vpop.f32.mrf.mxu0
      %v1735 = vadd.f32 %v1686, %v1734
      %v1736 = vpop.f32.mrf.mxu0
      %v1737 = vadd.f32 %v1688, %v1736
      %1738 = vmatmul.bf16.gmra.mxu0 %v1238
      %v1739 = vpop.f32.mrf.mxu0
      %v1740 = vadd.f32 %v1691, %v1739
      %v1741 = vpop.f32.mrf.mxu0
      %v1742 = vadd.f32 %v1693, %v1741
      %1743 = vmatmul.bf16.gmra.mxu0 %v1241
      %v1744 = vpop.f32.mrf.mxu0
      %v1745 = vadd.f32 %v1696, %v1744
      %v1746 = vpop.f32.mrf.mxu0
      %v1747 = vadd.f32 %v1698, %v1746
      %1748 = vdwg.mxu0
      %1749 = vmatpush.bf16.msra.mxu0 %v1576
      %1750 = vmatpush.bf16.msra.mxu0 %v1573
      %1751 = vmatpush.bf16.msra.mxu0 %v1570
      %1752 = vmatpush.bf16.msra.mxu0 %v1567
      %1753 = vmatpush.bf16.msra.mxu0 %v1564
      %1754 = vmatpush.bf16.msra.mxu0 %v1561
      %1755 = vmatpush.bf16.msra.mxu0 %v1558
      %1756 = vmatpush.bf16.msra.mxu0 %v1555
      %1757 = vmatmul.bf16.gmra.mxu0 %v1221
      %v1758 = vpop.f32.mrf.mxu0
      %v1759 = vadd.f32 %v1710, %v1758
      %v1760 = vpop.f32.mrf.mxu0
      %v1761 = vadd.f32 %v1712, %v1760
      %1762 = vmatmul.bf16.gmra.mxu0 %v1224
      %v1763 = vpop.f32.mrf.mxu0
      %v1764 = vadd.f32 %v1715, %v1763
      %v1765 = vpop.f32.mrf.mxu0
      %v1766 = vadd.f32 %v1717, %v1765
      %1767 = vmatmul.bf16.gmra.mxu0 %v1227
      %v1768 = vpop.f32.mrf.mxu0
      %v1769 = vadd.f32 %v1720, %v1768
      %v1770 = vpop.f32.mrf.mxu0
      %v1771 = vadd.f32 %v1722, %v1770
      %1772 = vmatmul.bf16.gmra.mxu0 %v1230
      %v1773 = vpop.f32.mrf.mxu0
      %v1774 = vadd.f32 %v1725, %v1773
      %v1775 = vpop.f32.mrf.mxu0
      %v1776 = vadd.f32 %v1727, %v1775
      %1777 = vmatmul.bf16.gmra.mxu0 %v1233
      %v1778 = vpop.f32.mrf.mxu0
      %v1779 = vadd.f32 %v1730, %v1778
      %v1780 = vpop.f32.mrf.mxu0
      %v1781 = vadd.f32 %v1732, %v1780
      %1782 = vmatmul.bf16.gmra.mxu0 %v1236
      %v1783 = vpop.f32.mrf.mxu0
      %v1784 = vadd.f32 %v1735, %v1783
      %v1785 = vpop.f32.mrf.mxu0
      %v1786 = vadd.f32 %v1737, %v1785
      %1787 = vmatmul.bf16.gmra.mxu0 %v1239
      %v1788 = vpop.f32.mrf.mxu0
      %v1789 = vadd.f32 %v1740, %v1788
      %v1790 = vpop.f32.mrf.mxu0
      %v1791 = vadd.f32 %v1742, %v1790
      %1792 = vmatmul.bf16.gmra.mxu0 %v1242
      %v1793 = vpop.f32.mrf.mxu0
      %v1794 = vadd.f32 %v1745, %v1793
      %v1795 = vpop.f32.mrf.mxu0
      %v1796 = vadd.f32 %v1747, %v1795
      %1797 = vdwg.mxu0
      %1798 = vmatpush.bf16.msra.mxu0 %v1529
      %1799 = vmatpush.bf16.msra.mxu0 %v1526
      %1800 = vmatpush.bf16.msra.mxu0 %v1523
      %1801 = vmatpush.bf16.msra.mxu0 %v1520
      %1802 = vmatpush.bf16.msra.mxu0 %v1517
      %1803 = vmatpush.bf16.msra.mxu0 %v1514
      %1804 = vmatpush.bf16.msra.mxu0 %v1511
      %1805 = vmatpush.bf16.msra.mxu0 %v1508
      %1806 = vmatmul.bf16.gmra.mxu0 %v1219
      %v1807 = vpop.f32.mrf.mxu0
      %v1808 = vadd.f32 0.0, %v1807
      %v1809 = vpop.f32.mrf.mxu0
      %v1810 = vadd.f32 0.0, %v1809
      %1811 = vmatmul.bf16.gmra.mxu0 %v1222
      %v1812 = vpop.f32.mrf.mxu0
      %v1813 = vadd.f32 0.0, %v1812
      %v1814 = vpop.f32.mrf.mxu0
      %v1815 = vadd.f32 0.0, %v1814
      %1816 = vmatmul.bf16.gmra.mxu0 %v1225
      %v1817 = vpop.f32.mrf.mxu0
      %v1818 = vadd.f32 0.0, %v1817
      %v1819 = vpop.f32.mrf.mxu0
      %v1820 = vadd.f32 0.0, %v1819
      %1821 = vmatmul.bf16.gmra.mxu0 %v1228
      %v1822 = vpop.f32.mrf.mxu0
      %v1823 = vadd.f32 0.0, %v1822
      %v1824 = vpop.f32.mrf.mxu0
      %v1825 = vadd.f32 0.0, %v1824
      %1826 = vmatmul.bf16.gmra.mxu0 %v1231
      %v1827 = vpop.f32.mrf.mxu0
      %v1828 = vadd.f32 0.0, %v1827
      %v1829 = vpop.f32.mrf.mxu0
      %v1830 = vadd.f32 0.0, %v1829
      %1831 = vmatmul.bf16.gmra.mxu0 %v1234
      %v1832 = vpop.f32.mrf.mxu0
      %v1833 = vadd.f32 0.0, %v1832
      %v1834 = vpop.f32.mrf.mxu0
      %v1835 = vadd.f32 0.0, %v1834
      %1836 = vmatmul.bf16.gmra.mxu0 %v1237
      %v1837 = vpop.f32.mrf.mxu0
      %v1838 = vadd.f32 0.0, %v1837
      %v1839 = vpop.f32.mrf.mxu0
      %v1840 = vadd.f32 0.0, %v1839
      %1841 = vmatmul.bf16.gmra.mxu0 %v1240
      %v1842 = vpop.f32.mrf.mxu0
      %v1843 = vadd.f32 0.0, %v1842
      %v1844 = vpop.f32.mrf.mxu0
      %v1845 = vadd.f32 0.0, %v1844
      %1846 = vdwg.mxu0
      %1847 = vmatpush.bf16.msra.mxu0 %v1553
      %1848 = vmatpush.bf16.msra.mxu0 %v1550
      %1849 = vmatpush.bf16.msra.mxu0 %v1547
      %1850 = vmatpush.bf16.msra.mxu0 %v1544
      %1851 = vmatpush.bf16.msra.mxu0 %v1541
      %1852 = vmatpush.bf16.msra.mxu0 %v1538
      %1853 = vmatpush.bf16.msra.mxu0 %v1535
      %1854 = vmatpush.bf16.msra.mxu0 %v1532
      %1855 = vmatmul.bf16.gmra.mxu0 %v1220
      %v1856 = vpop.f32.mrf.mxu0
      %v1857 = vadd.f32 %v1808, %v1856
      %v1858 = vpop.f32.mrf.mxu0
      %v1859 = vadd.f32 %v1810, %v1858
      %1860 = vmatmul.bf16.gmra.mxu0 %v1223
      %v1861 = vpop.f32.mrf.mxu0
      %v1862 = vadd.f32 %v1813, %v1861
      %v1863 = vpop.f32.mrf.mxu0
      %v1864 = vadd.f32 %v1815, %v1863
      %1865 = vmatmul.bf16.gmra.mxu0 %v1226
      %v1866 = vpop.f32.mrf.mxu0
      %v1867 = vadd.f32 %v1818, %v1866
      %v1868 = vpop.f32.mrf.mxu0
      %v1869 = vadd.f32 %v1820, %v1868
      %1870 = vmatmul.bf16.gmra.mxu0 %v1229
      %v1871 = vpop.f32.mrf.mxu0
      %v1872 = vadd.f32 %v1823, %v1871
      %v1873 = vpop.f32.mrf.mxu0
      %v1874 = vadd.f32 %v1825, %v1873
      %1875 = vmatmul.bf16.gmra.mxu0 %v1232
      %v1876 = vpop.f32.mrf.mxu0
      %v1877 = vadd.f32 %v1828, %v1876
      %v1878 = vpop.f32.mrf.mxu0
      %v1879 = vadd.f32 %v1830, %v1878
      %1880 = vmatmul.bf16.gmra.mxu0 %v1235
      %v1881 = vpop.f32.mrf.mxu0
      %v1882 = vadd.f32 %v1833, %v1881
      %v1883 = vpop.f32.mrf.mxu0
      %v1884 = vadd.f32 %v1835, %v1883
      %1885 = vmatmul.bf16.gmra.mxu0 %v1238
      %v1886 = vpop.f32.mrf.mxu0
      %v1887 = vadd.f32 %v1838, %v1886
      %v1888 = vpop.f32.mrf.mxu0
      %v1889 = vadd.f32 %v1840, %v1888
      %1890 = vmatmul.bf16.gmra.mxu0 %v1241
      %v1891 = vpop.f32.mrf.mxu0
      %v1892 = vadd.f32 %v1843, %v1891
      %v1893 = vpop.f32.mrf.mxu0
      %v1894 = vadd.f32 %v1845, %v1893
      %1895 = vdwg.mxu0
      %1896 = vmatpush.bf16.msra.mxu0 %v1577
      %1897 = vmatpush.bf16.msra.mxu0 %v1574
      %1898 = vmatpush.bf16.msra.mxu0 %v1571
      %1899 = vmatpush.bf16.msra.mxu0 %v1568
      %1900 = vmatpush.bf16.msra.mxu0 %v1565
      %1901 = vmatpush.bf16.msra.mxu0 %v1562
      %1902 = vmatpush.bf16.msra.mxu0 %v1559
      %1903 = vmatpush.bf16.msra.mxu0 %v1556
      %1904 = vmatmul.bf16.gmra.mxu0 %v1221
      %v1905 = vpop.f32.mrf.mxu0
      %v1906 = vadd.f32 %v1857, %v1905
      %v1907 = vpop.f32.mrf.mxu0
      %v1908 = vadd.f32 %v1859, %v1907
      %1909 = vmatmul.bf16.gmra.mxu0 %v1224
      %v1910 = vpop.f32.mrf.mxu0
      %v1911 = vadd.f32 %v1862, %v1910
      %v1912 = vpop.f32.mrf.mxu0
      %v1913 = vadd.f32 %v1864, %v1912
      %1914 = vmatmul.bf16.gmra.mxu0 %v1227
      %v1915 = vpop.f32.mrf.mxu0
      %v1916 = vadd.f32 %v1867, %v1915
      %v1917 = vpop.f32.mrf.mxu0
      %v1918 = vadd.f32 %v1869, %v1917
      %1919 = vmatmul.bf16.gmra.mxu0 %v1230
      %v1920 = vpop.f32.mrf.mxu0
      %v1921 = vadd.f32 %v1872, %v1920
      %v1922 = vpop.f32.mrf.mxu0
      %v1923 = vadd.f32 %v1874, %v1922
      %1924 = vmatmul.bf16.gmra.mxu0 %v1233
      %v1925 = vpop.f32.mrf.mxu0
      %v1926 = vadd.f32 %v1877, %v1925
      %v1927 = vpop.f32.mrf.mxu0
      %v1928 = vadd.f32 %v1879, %v1927
      %1929 = vmatmul.bf16.gmra.mxu0 %v1236
      %v1930 = vpop.f32.mrf.mxu0
      %v1931 = vadd.f32 %v1882, %v1930
      %v1932 = vpop.f32.mrf.mxu0
      %v1933 = vadd.f32 %v1884, %v1932
      %1934 = vmatmul.bf16.gmra.mxu0 %v1239
      %v1935 = vpop.f32.mrf.mxu0
      %v1936 = vadd.f32 %v1887, %v1935
      %v1937 = vpop.f32.mrf.mxu0
      %v1938 = vadd.f32 %v1889, %v1937
      %1939 = vmatmul.bf16.gmra.mxu0 %v1242
      %v1940 = vpop.f32.mrf.mxu0
      %v1941 = vadd.f32 %v1892, %v1940
      %v1942 = vpop.f32.mrf.mxu0
      %v1943 = vadd.f32 %v1894, %v1942
      %1944 = vdwg.mxu0
      %1945 = vmatpush.bf16.msra.mxu0 %v1530
      %1946 = vmatpush.bf16.msra.mxu0 %v1527
      %1947 = vmatpush.bf16.msra.mxu0 %v1524
      %1948 = vmatpush.bf16.msra.mxu0 %v1521
      %1949 = vmatpush.bf16.msra.mxu0 %v1518
      %1950 = vmatpush.bf16.msra.mxu0 %v1515
      %1951 = vmatpush.bf16.msra.mxu0 %v1512
      %1952 = vmatpush.bf16.msra.mxu0 %v1509
      %1953 = vmatmul.bf16.gmra.mxu0 %v1219
      %v1954 = vpop.f32.mrf.mxu0
      %v1955 = vadd.f32 0.0, %v1954
      %v1956 = vpop.f32.mrf.mxu0
      %v1957 = vadd.f32 0.0, %v1956
      %1958 = vmatmul.bf16.gmra.mxu0 %v1222
      %v1959 = vpop.f32.mrf.mxu0
      %v1960 = vadd.f32 0.0, %v1959
      %v1961 = vpop.f32.mrf.mxu0
      %v1962 = vadd.f32 0.0, %v1961
      %1963 = vmatmul.bf16.gmra.mxu0 %v1225
      %v1964 = vpop.f32.mrf.mxu0
      %v1965 = vadd.f32 0.0, %v1964
      %v1966 = vpop.f32.mrf.mxu0
      %v1967 = vadd.f32 0.0, %v1966
      %1968 = vmatmul.bf16.gmra.mxu0 %v1228
      %v1969 = vpop.f32.mrf.mxu0
      %v1970 = vadd.f32 0.0, %v1969
      %v1971 = vpop.f32.mrf.mxu0
      %v1972 = vadd.f32 0.0, %v1971
      %1973 = vmatmul.bf16.gmra.mxu0 %v1231
      %v1974 = vpop.f32.mrf.mxu0
      %v1975 = vadd.f32 0.0, %v1974
      %v1976 = vpop.f32.mrf.mxu0
      %v1977 = vadd.f32 0.0, %v1976
      %1978 = vmatmul.bf16.gmra.mxu0 %v1234
      %v1979 = vpop.f32.mrf.mxu0
      %v1980 = vadd.f32 0.0, %v1979
      %v1981 = vpop.f32.mrf.mxu0
      %v1982 = vadd.f32 0.0, %v1981
      %1983 = vmatmul.bf16.gmra.mxu0 %v1237
      %v1984 = vpop.f32.mrf.mxu0
      %v1985 = vadd.f32 0.0, %v1984
      %v1986 = vpop.f32.mrf.mxu0
      %v1987 = vadd.f32 0.0, %v1986
      %1988 = vmatmul.bf16.gmra.mxu0 %v1240
      %v1989 = vpop.f32.mrf.mxu0
      %v1990 = vadd.f32 0.0, %v1989
      %v1991 = vpop.f32.mrf.mxu0
      %v1992 = vadd.f32 0.0, %v1991
      %1993 = vdwg.mxu0
      %1994 = vmatpush.bf16.msra.mxu0 %v1554
      %1995 = vmatpush.bf16.msra.mxu0 %v1551
      %1996 = vmatpush.bf16.msra.mxu0 %v1548
      %1997 = vmatpush.bf16.msra.mxu0 %v1545
      %1998 = vmatpush.bf16.msra.mxu0 %v1542
      %1999 = vmatpush.bf16.msra.mxu0 %v1539
      %2000 = vmatpush.bf16.msra.mxu0 %v1536
      %2001 = vmatpush.bf16.msra.mxu0 %v1533
      %2002 = vmatmul.bf16.gmra.mxu0 %v1220
      %v2003 = vpop.f32.mrf.mxu0
      %v2004 = vadd.f32 %v1955, %v2003
      %v2005 = vpop.f32.mrf.mxu0
      %v2006 = vadd.f32 %v1957, %v2005
      %2007 = vmatmul.bf16.gmra.mxu0 %v1223
      %v2008 = vpop.f32.mrf.mxu0
      %v2009 = vadd.f32 %v1960, %v2008
      %v2010 = vpop.f32.mrf.mxu0
      %v2011 = vadd.f32 %v1962, %v2010
      %2012 = vmatmul.bf16.gmra.mxu0 %v1226
      %v2013 = vpop.f32.mrf.mxu0
      %v2014 = vadd.f32 %v1965, %v2013
      %v2015 = vpop.f32.mrf.mxu0
      %v2016 = vadd.f32 %v1967, %v2015
      %2017 = vmatmul.bf16.gmra.mxu0 %v1229
      %v2018 = vpop.f32.mrf.mxu0
      %v2019 = vadd.f32 %v1970, %v2018
      %v2020 = vpop.f32.mrf.mxu0
      %v2021 = vadd.f32 %v1972, %v2020
      %2022 = vmatmul.bf16.gmra.mxu0 %v1232
      %v2023 = vpop.f32.mrf.mxu0
      %v2024 = vadd.f32 %v1975, %v2023
      %v2025 = vpop.f32.mrf.mxu0
      %v2026 = vadd.f32 %v1977, %v2025
      %2027 = vmatmul.bf16.gmra.mxu0 %v1235
      %v2028 = vpop.f32.mrf.mxu0
      %v2029 = vadd.f32 %v1980, %v2028
      %v2030 = vpop.f32.mrf.mxu0
      %v2031 = vadd.f32 %v1982, %v2030
      %2032 = vmatmul.bf16.gmra.mxu0 %v1238
      %v2033 = vpop.f32.mrf.mxu0
      %v2034 = vadd.f32 %v1985, %v2033
      %v2035 = vpop.f32.mrf.mxu0
      %v2036 = vadd.f32 %v1987, %v2035
      %2037 = vmatmul.bf16.gmra.mxu0 %v1241
      %v2038 = vpop.f32.mrf.mxu0
      %v2039 = vadd.f32 %v1990, %v2038
      %v2040 = vpop.f32.mrf.mxu0
      %v2041 = vadd.f32 %v1992, %v2040
      %2042 = vdwg.mxu0
      %2043 = vmatpush.bf16.msra.mxu0 %v1578
      %2044 = vmatpush.bf16.msra.mxu0 %v1575
      %2045 = vmatpush.bf16.msra.mxu0 %v1572
      %2046 = vmatpush.bf16.msra.mxu0 %v1569
      %2047 = vmatpush.bf16.msra.mxu0 %v1566
      %2048 = vmatpush.bf16.msra.mxu0 %v1563
      %2049 = vmatpush.bf16.msra.mxu0 %v1560
      %2050 = vmatpush.bf16.msra.mxu0 %v1557
      %2051 = vmatmul.bf16.gmra.mxu0 %v1221
      %v2052 = vpop.f32.mrf.mxu0
      %v2053 = vadd.f32 %v2004, %v2052
      %v2054 = vpop.f32.mrf.mxu0
      %v2055 = vadd.f32 %v2006, %v2054
      %2056 = vmatmul.bf16.gmra.mxu0 %v1224
      %v2057 = vpop.f32.mrf.mxu0
      %v2058 = vadd.f32 %v2009, %v2057
      %v2059 = vpop.f32.mrf.mxu0
      %v2060 = vadd.f32 %v2011, %v2059
      %2061 = vmatmul.bf16.gmra.mxu0 %v1227
      %v2062 = vpop.f32.mrf.mxu0
      %v2063 = vadd.f32 %v2014, %v2062
      %v2064 = vpop.f32.mrf.mxu0
      %v2065 = vadd.f32 %v2016, %v2064
      %2066 = vmatmul.bf16.gmra.mxu0 %v1230
      %v2067 = vpop.f32.mrf.mxu0
      %v2068 = vadd.f32 %v2019, %v2067
      %v2069 = vpop.f32.mrf.mxu0
      %v2070 = vadd.f32 %v2021, %v2069
      %2071 = vmatmul.bf16.gmra.mxu0 %v1233
      %v2072 = vpop.f32.mrf.mxu0
      %v2073 = vadd.f32 %v2024, %v2072
      %v2074 = vpop.f32.mrf.mxu0
      %v2075 = vadd.f32 %v2026, %v2074
      %2076 = vmatmul.bf16.gmra.mxu0 %v1236
      %v2077 = vpop.f32.mrf.mxu0
      %v2078 = vadd.f32 %v2029, %v2077
      %v2079 = vpop.f32.mrf.mxu0
      %v2080 = vadd.f32 %v2031, %v2079
      %2081 = vmatmul.bf16.gmra.mxu0 %v1239
      %v2082 = vpop.f32.mrf.mxu0
      %v2083 = vadd.f32 %v2034, %v2082
      %v2084 = vpop.f32.mrf.mxu0
      %v2085 = vadd.f32 %v2036, %v2084
      %2086 = vmatmul.bf16.gmra.mxu0 %v1242
      %v2087 = vpop.f32.mrf.mxu0
      %v2088 = vadd.f32 %v2039, %v2087
      %v2089 = vpop.f32.mrf.mxu0
      %v2090 = vadd.f32 %v2041, %v2089
      %2091 = vdwg.mxu0
      %v2092 = vxor.u32 %v1759, 2147483648
      %v2093 = vxor.u32 %v1906, 2147483648
      %v2094 = vxor.u32 %v2053, 2147483648
      %v2095 = vxor.u32 %v1761, 2147483648
      %v2096 = vxor.u32 %v1908, 2147483648
      %v2097 = vxor.u32 %v2055, 2147483648
      %v2098 = vxor.u32 %v1764, 2147483648
      %v2099 = vxor.u32 %v1911, 2147483648
      %v2100 = vxor.u32 %v2058, 2147483648
      %v2101 = vxor.u32 %v1766, 2147483648
      %v2102 = vxor.u32 %v1913, 2147483648
      %v2103 = vxor.u32 %v2060, 2147483648
      %v2104 = vmul.f32 %v2092, 1.442695
      %v2105 = vpow.pop %v2104
      %v2106 = vmul.f32 %v2093, 1.442695
      %v2107 = vpow.pop %v2106
      %v2108 = vmul.f32 %v2094, 1.442695
      %v2109 = vpow.pop %v2108
      %v2110 = vmul.f32 %v2095, 1.442695
      %v2111 = vpow.pop %v2110
      %v2112 = vmul.f32 %v2096, 1.442695
      %v2113 = vpow.pop %v2112
      %v2114 = vmul.f32 %v2097, 1.442695
      %v2115 = vpow.pop %v2114
      %v2116 = vmul.f32 %v2098, 1.442695
      %v2117 = vpow.pop %v2116
      %v2118 = vmul.f32 %v2099, 1.442695
      %v2119 = vpow.pop %v2118
      %v2120 = vmul.f32 %v2100, 1.442695
      %v2121 = vpow.pop %v2120
      %v2122 = vmul.f32 %v2101, 1.442695
      %v2123 = vpow.pop %v2122
      %v2124 = vmul.f32 %v2102, 1.442695
      %v2125 = vpow.pop %v2124
      %v2126 = vmul.f32 %v2103, 1.442695
      %v2127 = vpow.pop %v2126
      %v2128 = vadd.f32 %v2105, 1.0
      %v2129 = vadd.f32 %v2107, 1.0
      %v2130 = vadd.f32 %v2109, 1.0
      %v2131 = vadd.f32 %v2111, 1.0
      %v2132 = vadd.f32 %v2113, 1.0
      %v2133 = vadd.f32 %v2115, 1.0
      %v2134 = vadd.f32 %v2117, 1.0
      %v2135 = vadd.f32 %v2119, 1.0
      %v2136 = vadd.f32 %v2121, 1.0
      %v2137 = vadd.f32 %v2123, 1.0
      %v2138 = vadd.f32 %v2125, 1.0
      %v2139 = vadd.f32 %v2127, 1.0
      %v2140 = vrcp.pop %v2128
      %v2141 = vmul.f32 %v2128, %v2140
      %v2142 = vsub.f32 1.0, %v2141
      %v2143 = vmul.f32 %v2140, %v2142
      %v2144 = vadd.f32 %v2140, %v2143
      %vm2145 = vweird.f32 %v2128
      %vm2146 = vweird.f32 %v2140
      %vm2147 = vmor %vm2145, %vm2146
      %v2148 = vsel %vm2147, %v2140, %v2144
      %v2149 = vand.u32 2147483647, %v2128
      %vm2150 = vcmp.eq.f32.partialorder %v2149, 8.507059e+37
      %v2151 = vand.u32 %v2128, 2147483648
      %v2152 = vor.u32 1.1754944e-38, %v2151
      %v2153 = vsel %vm2150, %v2152, %v2148
      %v2154 = vmul.f32 1.0, %v2153
      %v2155 = vrcp.pop %v2129
      %v2156 = vmul.f32 %v2129, %v2155
      %v2157 = vsub.f32 1.0, %v2156
      %v2158 = vmul.f32 %v2155, %v2157
      %v2159 = vadd.f32 %v2155, %v2158
      %vm2160 = vweird.f32 %v2129
      %vm2161 = vweird.f32 %v2155
      %vm2162 = vmor %vm2160, %vm2161
      %v2163 = vsel %vm2162, %v2155, %v2159
      %v2164 = vand.u32 2147483647, %v2129
      %vm2165 = vcmp.eq.f32.partialorder %v2164, 8.507059e+37
      %v2166 = vand.u32 %v2129, 2147483648
      %v2167 = vor.u32 1.1754944e-38, %v2166
      %v2168 = vsel %vm2165, %v2167, %v2163
      %v2169 = vmul.f32 1.0, %v2168
      %v2170 = vrcp.pop %v2130
      %v2171 = vmul.f32 %v2130, %v2170
      %v2172 = vsub.f32 1.0, %v2171
      %v2173 = vmul.f32 %v2170, %v2172
      %v2174 = vadd.f32 %v2170, %v2173
      %vm2175 = vweird.f32 %v2130
      %vm2176 = vweird.f32 %v2170
      %vm2177 = vmor %vm2175, %vm2176
      %v2178 = vsel %vm2177, %v2170, %v2174
      %v2179 = vand.u32 2147483647, %v2130
      %vm2180 = vcmp.eq.f32.partialorder %v2179, 8.507059e+37
      %v2181 = vand.u32 %v2130, 2147483648
      %v2182 = vor.u32 1.1754944e-38, %v2181
      %v2183 = vsel %vm2180, %v2182, %v2178
      %v2184 = vmul.f32 1.0, %v2183
      %v2185 = vrcp.pop %v2131
      %v2186 = vmul.f32 %v2131, %v2185
      %v2187 = vsub.f32 1.0, %v2186
      %v2188 = vmul.f32 %v2185, %v2187
      %v2189 = vadd.f32 %v2185, %v2188
      %vm2190 = vweird.f32 %v2131
      %vm2191 = vweird.f32 %v2185
      %vm2192 = vmor %vm2190, %vm2191
      %v2193 = vsel %vm2192, %v2185, %v2189
      %v2194 = vand.u32 2147483647, %v2131
      %vm2195 = vcmp.eq.f32.partialorder %v2194, 8.507059e+37
      %v2196 = vand.u32 %v2131, 2147483648
      %v2197 = vor.u32 1.1754944e-38, %v2196
      %v2198 = vsel %vm2195, %v2197, %v2193
      %v2199 = vmul.f32 1.0, %v2198
      %v2200 = vrcp.pop %v2132
      %v2201 = vmul.f32 %v2132, %v2200
      %v2202 = vsub.f32 1.0, %v2201
      %v2203 = vmul.f32 %v2200, %v2202
      %v2204 = vadd.f32 %v2200, %v2203
      %vm2205 = vweird.f32 %v2132
      %vm2206 = vweird.f32 %v2200
      %vm2207 = vmor %vm2205, %vm2206
      %v2208 = vsel %vm2207, %v2200, %v2204
      %v2209 = vand.u32 2147483647, %v2132
      %vm2210 = vcmp.eq.f32.partialorder %v2209, 8.507059e+37
      %v2211 = vand.u32 %v2132, 2147483648
      %v2212 = vor.u32 1.1754944e-38, %v2211
      %v2213 = vsel %vm2210, %v2212, %v2208
      %v2214 = vmul.f32 1.0, %v2213
      %v2215 = vrcp.pop %v2133
      %v2216 = vmul.f32 %v2133, %v2215
      %v2217 = vsub.f32 1.0, %v2216
      %v2218 = vmul.f32 %v2215, %v2217
      %v2219 = vadd.f32 %v2215, %v2218
      %vm2220 = vweird.f32 %v2133
      %vm2221 = vweird.f32 %v2215
      %vm2222 = vmor %vm2220, %vm2221
      %v2223 = vsel %vm2222, %v2215, %v2219
      %v2224 = vand.u32 2147483647, %v2133
      %vm2225 = vcmp.eq.f32.partialorder %v2224, 8.507059e+37
      %v2226 = vand.u32 %v2133, 2147483648
      %v2227 = vor.u32 1.1754944e-38, %v2226
      %v2228 = vsel %vm2225, %v2227, %v2223
      %v2229 = vmul.f32 1.0, %v2228
      %v2230 = vrcp.pop %v2134
      %v2231 = vmul.f32 %v2134, %v2230
      %v2232 = vsub.f32 1.0, %v2231
      %v2233 = vmul.f32 %v2230, %v2232
      %v2234 = vadd.f32 %v2230, %v2233
      %vm2235 = vweird.f32 %v2134
      %vm2236 = vweird.f32 %v2230
      %vm2237 = vmor %vm2235, %vm2236
      %v2238 = vsel %vm2237, %v2230, %v2234
      %v2239 = vand.u32 2147483647, %v2134
      %vm2240 = vcmp.eq.f32.partialorder %v2239, 8.507059e+37
      %v2241 = vand.u32 %v2134, 2147483648
      %v2242 = vor.u32 1.1754944e-38, %v2241
      %v2243 = vsel %vm2240, %v2242, %v2238
      %v2244 = vmul.f32 1.0, %v2243
      %v2245 = vrcp.pop %v2135
      %v2246 = vmul.f32 %v2135, %v2245
      %v2247 = vsub.f32 1.0, %v2246
      %v2248 = vmul.f32 %v2245, %v2247
      %v2249 = vadd.f32 %v2245, %v2248
      %vm2250 = vweird.f32 %v2135
      %vm2251 = vweird.f32 %v2245
      %vm2252 = vmor %vm2250, %vm2251
      %v2253 = vsel %vm2252, %v2245, %v2249
      %v2254 = vand.u32 2147483647, %v2135
      %vm2255 = vcmp.eq.f32.partialorder %v2254, 8.507059e+37
      %v2256 = vand.u32 %v2135, 2147483648
      %v2257 = vor.u32 1.1754944e-38, %v2256
      %v2258 = vsel %vm2255, %v2257, %v2253
      %v2259 = vmul.f32 1.0, %v2258
      %v2260 = vrcp.pop %v2136
      %v2261 = vmul.f32 %v2136, %v2260
      %v2262 = vsub.f32 1.0, %v2261
      %v2263 = vmul.f32 %v2260, %v2262
      %v2264 = vadd.f32 %v2260, %v2263
      %vm2265 = vweird.f32 %v2136
      %vm2266 = vweird.f32 %v2260
      %vm2267 = vmor %vm2265, %vm2266
      %v2268 = vsel %vm2267, %v2260, %v2264
      %v2269 = vand.u32 2147483647, %v2136
      %vm2270 = vcmp.eq.f32.partialorder %v2269, 8.507059e+37
      %v2271 = vand.u32 %v2136, 2147483648
      %v2272 = vor.u32 1.1754944e-38, %v2271
      %v2273 = vsel %vm2270, %v2272, %v2268
      %v2274 = vmul.f32 1.0, %v2273
      %v2275 = vrcp.pop %v2137
      %v2276 = vmul.f32 %v2137, %v2275
      %v2277 = vsub.f32 1.0, %v2276
      %v2278 = vmul.f32 %v2275, %v2277
      %v2279 = vadd.f32 %v2275, %v2278
      %vm2280 = vweird.f32 %v2137
      %vm2281 = vweird.f32 %v2275
      %vm2282 = vmor %vm2280, %vm2281
      %v2283 = vsel %vm2282, %v2275, %v2279
      %v2284 = vand.u32 2147483647, %v2137
      %vm2285 = vcmp.eq.f32.partialorder %v2284, 8.507059e+37
      %v2286 = vand.u32 %v2137, 2147483648
      %v2287 = vor.u32 1.1754944e-38, %v2286
      %v2288 = vsel %vm2285, %v2287, %v2283
      %v2289 = vmul.f32 1.0, %v2288
      %v2290 = vrcp.pop %v2138
      %v2291 = vmul.f32 %v2138, %v2290
      %v2292 = vsub.f32 1.0, %v2291
      %v2293 = vmul.f32 %v2290, %v2292
      %v2294 = vadd.f32 %v2290, %v2293
      %vm2295 = vweird.f32 %v2138
      %vm2296 = vweird.f32 %v2290
      %vm2297 = vmor %vm2295, %vm2296
      %v2298 = vsel %vm2297, %v2290, %v2294
      %v2299 = vand.u32 2147483647, %v2138
      %vm2300 = vcmp.eq.f32.partialorder %v2299, 8.507059e+37
      %v2301 = vand.u32 %v2138, 2147483648
      %v2302 = vor.u32 1.1754944e-38, %v2301
      %v2303 = vsel %vm2300, %v2302, %v2298
      %v2304 = vmul.f32 1.0, %v2303
      %v2305 = vrcp.pop %v2139
      %v2306 = vmul.f32 %v2139, %v2305
      %v2307 = vsub.f32 1.0, %v2306
      %v2308 = vmul.f32 %v2305, %v2307
      %v2309 = vadd.f32 %v2305, %v2308
      %vm2310 = vweird.f32 %v2139
      %vm2311 = vweird.f32 %v2305
      %vm2312 = vmor %vm2310, %vm2311
      %v2313 = vsel %vm2312, %v2305, %v2309
      %v2314 = vand.u32 2147483647, %v2139
      %vm2315 = vcmp.eq.f32.partialorder %v2314, 8.507059e+37
      %v2316 = vand.u32 %v2139, 2147483648
      %v2317 = vor.u32 1.1754944e-38, %v2316
      %v2318 = vsel %vm2315, %v2317, %v2313
      %v2319 = vmul.f32 1.0, %v2318
      %v2320 = vxor.u32 %v1769, 2147483648
      %v2321 = vxor.u32 %v1916, 2147483648
      %v2322 = vxor.u32 %v2063, 2147483648
      %v2323 = vxor.u32 %v1771, 2147483648
      %v2324 = vxor.u32 %v1918, 2147483648
      %v2325 = vxor.u32 %v2065, 2147483648
      %v2326 = vxor.u32 %v1774, 2147483648
      %v2327 = vxor.u32 %v1921, 2147483648
      %v2328 = vxor.u32 %v2068, 2147483648
      %v2329 = vxor.u32 %v1776, 2147483648
      %v2330 = vxor.u32 %v1923, 2147483648
      %v2331 = vxor.u32 %v2070, 2147483648
      %v2332 = vmul.f32 %v2320, 1.442695
      %v2333 = vpow.pop %v2332
      %v2334 = vmul.f32 %v2321, 1.442695
      %v2335 = vpow.pop %v2334
      %v2336 = vmul.f32 %v2322, 1.442695
      %v2337 = vpow.pop %v2336
      %v2338 = vmul.f32 %v2323, 1.442695
      %v2339 = vpow.pop %v2338
      %v2340 = vmul.f32 %v2324, 1.442695
      %v2341 = vpow.pop %v2340
      %v2342 = vmul.f32 %v2325, 1.442695
      %v2343 = vpow.pop %v2342
      %v2344 = vmul.f32 %v2326, 1.442695
      %v2345 = vpow.pop %v2344
      %v2346 = vmul.f32 %v2327, 1.442695
      %v2347 = vpow.pop %v2346
      %v2348 = vmul.f32 %v2328, 1.442695
      %v2349 = vpow.pop %v2348
      %v2350 = vmul.f32 %v2329, 1.442695
      %v2351 = vpow.pop %v2350
      %v2352 = vmul.f32 %v2330, 1.442695
      %v2353 = vpow.pop %v2352
      %v2354 = vmul.f32 %v2331, 1.442695
      %v2355 = vpow.pop %v2354
      %v2356 = vadd.f32 %v2333, 1.0
      %v2357 = vadd.f32 %v2335, 1.0
      %v2358 = vadd.f32 %v2337, 1.0
      %v2359 = vadd.f32 %v2339, 1.0
      %v2360 = vadd.f32 %v2341, 1.0
      %v2361 = vadd.f32 %v2343, 1.0
      %v2362 = vadd.f32 %v2345, 1.0
      %v2363 = vadd.f32 %v2347, 1.0
      %v2364 = vadd.f32 %v2349, 1.0
      %v2365 = vadd.f32 %v2351, 1.0
      %v2366 = vadd.f32 %v2353, 1.0
      %v2367 = vadd.f32 %v2355, 1.0
      %v2368 = vrcp.pop %v2356
      %v2369 = vmul.f32 %v2356, %v2368
      %v2370 = vsub.f32 1.0, %v2369
      %v2371 = vmul.f32 %v2368, %v2370
      %v2372 = vadd.f32 %v2368, %v2371
      %vm2373 = vweird.f32 %v2356
      %vm2374 = vweird.f32 %v2368
      %vm2375 = vmor %vm2373, %vm2374
      %v2376 = vsel %vm2375, %v2368, %v2372
      %v2377 = vand.u32 2147483647, %v2356
      %vm2378 = vcmp.eq.f32.partialorder %v2377, 8.507059e+37
      %v2379 = vand.u32 %v2356, 2147483648
      %v2380 = vor.u32 1.1754944e-38, %v2379
      %v2381 = vsel %vm2378, %v2380, %v2376
      %v2382 = vmul.f32 1.0, %v2381
      %v2383 = vrcp.pop %v2357
      %v2384 = vmul.f32 %v2357, %v2383
      %v2385 = vsub.f32 1.0, %v2384
      %v2386 = vmul.f32 %v2383, %v2385
      %v2387 = vadd.f32 %v2383, %v2386
      %vm2388 = vweird.f32 %v2357
      %vm2389 = vweird.f32 %v2383
      %vm2390 = vmor %vm2388, %vm2389
      %v2391 = vsel %vm2390, %v2383, %v2387
      %v2392 = vand.u32 2147483647, %v2357
      %vm2393 = vcmp.eq.f32.partialorder %v2392, 8.507059e+37
      %v2394 = vand.u32 %v2357, 2147483648
      %v2395 = vor.u32 1.1754944e-38, %v2394
      %v2396 = vsel %vm2393, %v2395, %v2391
      %v2397 = vmul.f32 1.0, %v2396
      %v2398 = vrcp.pop %v2358
      %v2399 = vmul.f32 %v2358, %v2398
      %v2400 = vsub.f32 1.0, %v2399
      %v2401 = vmul.f32 %v2398, %v2400
      %v2402 = vadd.f32 %v2398, %v2401
      %vm2403 = vweird.f32 %v2358
      %vm2404 = vweird.f32 %v2398
      %vm2405 = vmor %vm2403, %vm2404
      %v2406 = vsel %vm2405, %v2398, %v2402
      %v2407 = vand.u32 2147483647, %v2358
      %vm2408 = vcmp.eq.f32.partialorder %v2407, 8.507059e+37
      %v2409 = vand.u32 %v2358, 2147483648
      %v2410 = vor.u32 1.1754944e-38, %v2409
      %v2411 = vsel %vm2408, %v2410, %v2406
      %v2412 = vmul.f32 1.0, %v2411
      %v2413 = vrcp.pop %v2359
      %v2414 = vmul.f32 %v2359, %v2413
      %v2415 = vsub.f32 1.0, %v2414
      %v2416 = vmul.f32 %v2413, %v2415
      %v2417 = vadd.f32 %v2413, %v2416
      %vm2418 = vweird.f32 %v2359
      %vm2419 = vweird.f32 %v2413
      %vm2420 = vmor %vm2418, %vm2419
      %v2421 = vsel %vm2420, %v2413, %v2417
      %v2422 = vand.u32 2147483647, %v2359
      %vm2423 = vcmp.eq.f32.partialorder %v2422, 8.507059e+37
      %v2424 = vand.u32 %v2359, 2147483648
      %v2425 = vor.u32 1.1754944e-38, %v2424
      %v2426 = vsel %vm2423, %v2425, %v2421
      %v2427 = vmul.f32 1.0, %v2426
      %v2428 = vrcp.pop %v2360
      %v2429 = vmul.f32 %v2360, %v2428
      %v2430 = vsub.f32 1.0, %v2429
      %v2431 = vmul.f32 %v2428, %v2430
      %v2432 = vadd.f32 %v2428, %v2431
      %vm2433 = vweird.f32 %v2360
      %vm2434 = vweird.f32 %v2428
      %vm2435 = vmor %vm2433, %vm2434
      %v2436 = vsel %vm2435, %v2428, %v2432
      %v2437 = vand.u32 2147483647, %v2360
      %vm2438 = vcmp.eq.f32.partialorder %v2437, 8.507059e+37
      %v2439 = vand.u32 %v2360, 2147483648
      %v2440 = vor.u32 1.1754944e-38, %v2439
      %v2441 = vsel %vm2438, %v2440, %v2436
      %v2442 = vmul.f32 1.0, %v2441
      %v2443 = vrcp.pop %v2361
      %v2444 = vmul.f32 %v2361, %v2443
      %v2445 = vsub.f32 1.0, %v2444
      %v2446 = vmul.f32 %v2443, %v2445
      %v2447 = vadd.f32 %v2443, %v2446
      %vm2448 = vweird.f32 %v2361
      %vm2449 = vweird.f32 %v2443
      %vm2450 = vmor %vm2448, %vm2449
      %v2451 = vsel %vm2450, %v2443, %v2447
      %v2452 = vand.u32 2147483647, %v2361
      %vm2453 = vcmp.eq.f32.partialorder %v2452, 8.507059e+37
      %v2454 = vand.u32 %v2361, 2147483648
      %v2455 = vor.u32 1.1754944e-38, %v2454
      %v2456 = vsel %vm2453, %v2455, %v2451
      %v2457 = vmul.f32 1.0, %v2456
      %v2458 = vrcp.pop %v2362
      %v2459 = vmul.f32 %v2362, %v2458
      %v2460 = vsub.f32 1.0, %v2459
      %v2461 = vmul.f32 %v2458, %v2460
      %v2462 = vadd.f32 %v2458, %v2461
      %vm2463 = vweird.f32 %v2362
      %vm2464 = vweird.f32 %v2458
      %vm2465 = vmor %vm2463, %vm2464
      %v2466 = vsel %vm2465, %v2458, %v2462
      %v2467 = vand.u32 2147483647, %v2362
      %vm2468 = vcmp.eq.f32.partialorder %v2467, 8.507059e+37
      %v2469 = vand.u32 %v2362, 2147483648
      %v2470 = vor.u32 1.1754944e-38, %v2469
      %v2471 = vsel %vm2468, %v2470, %v2466
      %v2472 = vmul.f32 1.0, %v2471
      %v2473 = vrcp.pop %v2363
      %v2474 = vmul.f32 %v2363, %v2473
      %v2475 = vsub.f32 1.0, %v2474
      %v2476 = vmul.f32 %v2473, %v2475
      %v2477 = vadd.f32 %v2473, %v2476
      %vm2478 = vweird.f32 %v2363
      %vm2479 = vweird.f32 %v2473
      %vm2480 = vmor %vm2478, %vm2479
      %v2481 = vsel %vm2480, %v2473, %v2477
      %v2482 = vand.u32 2147483647, %v2363
      %vm2483 = vcmp.eq.f32.partialorder %v2482, 8.507059e+37
      %v2484 = vand.u32 %v2363, 2147483648
      %v2485 = vor.u32 1.1754944e-38, %v2484
      %v2486 = vsel %vm2483, %v2485, %v2481
      %v2487 = vmul.f32 1.0, %v2486
      %v2488 = vrcp.pop %v2364
      %v2489 = vmul.f32 %v2364, %v2488
      %v2490 = vsub.f32 1.0, %v2489
      %v2491 = vmul.f32 %v2488, %v2490
      %v2492 = vadd.f32 %v2488, %v2491
      %vm2493 = vweird.f32 %v2364
      %vm2494 = vweird.f32 %v2488
      %vm2495 = vmor %vm2493, %vm2494
      %v2496 = vsel %vm2495, %v2488, %v2492
      %v2497 = vand.u32 2147483647, %v2364
      %vm2498 = vcmp.eq.f32.partialorder %v2497, 8.507059e+37
      %v2499 = vand.u32 %v2364, 2147483648
      %v2500 = vor.u32 1.1754944e-38, %v2499
      %v2501 = vsel %vm2498, %v2500, %v2496
      %v2502 = vmul.f32 1.0, %v2501
      %v2503 = vrcp.pop %v2365
      %v2504 = vmul.f32 %v2365, %v2503
      %v2505 = vsub.f32 1.0, %v2504
      %v2506 = vmul.f32 %v2503, %v2505
      %v2507 = vadd.f32 %v2503, %v2506
      %vm2508 = vweird.f32 %v2365
      %vm2509 = vweird.f32 %v2503
      %vm2510 = vmor %vm2508, %vm2509
      %v2511 = vsel %vm2510, %v2503, %v2507
      %v2512 = vand.u32 2147483647, %v2365
      %vm2513 = vcmp.eq.f32.partialorder %v2512, 8.507059e+37
      %v2514 = vand.u32 %v2365, 2147483648
      %v2515 = vor.u32 1.1754944e-38, %v2514
      %v2516 = vsel %vm2513, %v2515, %v2511
      %v2517 = vmul.f32 1.0, %v2516
      %v2518 = vrcp.pop %v2366
      %v2519 = vmul.f32 %v2366, %v2518
      %v2520 = vsub.f32 1.0, %v2519
      %v2521 = vmul.f32 %v2518, %v2520
      %v2522 = vadd.f32 %v2518, %v2521
      %vm2523 = vweird.f32 %v2366
      %vm2524 = vweird.f32 %v2518
      %vm2525 = vmor %vm2523, %vm2524
      %v2526 = vsel %vm2525, %v2518, %v2522
      %v2527 = vand.u32 2147483647, %v2366
      %vm2528 = vcmp.eq.f32.partialorder %v2527, 8.507059e+37
      %v2529 = vand.u32 %v2366, 2147483648
      %v2530 = vor.u32 1.1754944e-38, %v2529
      %v2531 = vsel %vm2528, %v2530, %v2526
      %v2532 = vmul.f32 1.0, %v2531
      %v2533 = vrcp.pop %v2367
      %v2534 = vmul.f32 %v2367, %v2533
      %v2535 = vsub.f32 1.0, %v2534
      %v2536 = vmul.f32 %v2533, %v2535
      %v2537 = vadd.f32 %v2533, %v2536
      %vm2538 = vweird.f32 %v2367
      %vm2539 = vweird.f32 %v2533
      %vm2540 = vmor %vm2538, %vm2539
      %v2541 = vsel %vm2540, %v2533, %v2537
      %v2542 = vand.u32 2147483647, %v2367
      %vm2543 = vcmp.eq.f32.partialorder %v2542, 8.507059e+37
      %v2544 = vand.u32 %v2367, 2147483648
      %v2545 = vor.u32 1.1754944e-38, %v2544
      %v2546 = vsel %vm2543, %v2545, %v2541
      %v2547 = vmul.f32 1.0, %v2546
      %v2548 = vtanh.pop %v1779
      %v2549 = vtanh.pop %v1926
      %v2550 = vtanh.pop %v2073
      %v2551 = vtanh.pop %v1781
      %v2552 = vtanh.pop %v1928
      %v2553 = vtanh.pop %v2075
      %v2554 = vtanh.pop %v1784
      %v2555 = vtanh.pop %v1931
      %v2556 = vtanh.pop %v2078
      %v2557 = vtanh.pop %v1786
      %v2558 = vtanh.pop %v1933
      %v2559 = vtanh.pop %v2080
      %v2560 = vxor.u32 %v1789, 2147483648
      %v2561 = vxor.u32 %v1936, 2147483648
      %v2562 = vxor.u32 %v2083, 2147483648
      %v2563 = vxor.u32 %v1791, 2147483648
      %v2564 = vxor.u32 %v1938, 2147483648
      %v2565 = vxor.u32 %v2085, 2147483648
      %v2566 = vxor.u32 %v1794, 2147483648
      %v2567 = vxor.u32 %v1941, 2147483648
      %v2568 = vxor.u32 %v2088, 2147483648
      %v2569 = vxor.u32 %v1796, 2147483648
      %v2570 = vxor.u32 %v1943, 2147483648
      %v2571 = vxor.u32 %v2090, 2147483648
      %v2572 = vmul.f32 %v2560, 1.442695
      %v2573 = vpow.pop %v2572
      %v2574 = vmul.f32 %v2561, 1.442695
      %v2575 = vpow.pop %v2574
      %v2576 = vmul.f32 %v2562, 1.442695
      %v2577 = vpow.pop %v2576
      %v2578 = vmul.f32 %v2563, 1.442695
      %v2579 = vpow.pop %v2578
      %v2580 = vmul.f32 %v2564, 1.442695
      %v2581 = vpow.pop %v2580
      %v2582 = vmul.f32 %v2565, 1.442695
      %v2583 = vpow.pop %v2582
      %v2584 = vmul.f32 %v2566, 1.442695
      %v2585 = vpow.pop %v2584
      %v2586 = vmul.f32 %v2567, 1.442695
      %v2587 = vpow.pop %v2586
      %v2588 = vmul.f32 %v2568, 1.442695
      %v2589 = vpow.pop %v2588
      %v2590 = vmul.f32 %v2569, 1.442695
      %v2591 = vpow.pop %v2590
      %v2592 = vmul.f32 %v2570, 1.442695
      %v2593 = vpow.pop %v2592
      %v2594 = vmul.f32 %v2571, 1.442695
      %v2595 = vpow.pop %v2594
      %v2596 = vadd.f32 %v2573, 1.0
      %v2597 = vadd.f32 %v2575, 1.0
      %v2598 = vadd.f32 %v2577, 1.0
      %v2599 = vadd.f32 %v2579, 1.0
      %v2600 = vadd.f32 %v2581, 1.0
      %v2601 = vadd.f32 %v2583, 1.0
      %v2602 = vadd.f32 %v2585, 1.0
      %v2603 = vadd.f32 %v2587, 1.0
      %v2604 = vadd.f32 %v2589, 1.0
      %v2605 = vadd.f32 %v2591, 1.0
      %v2606 = vadd.f32 %v2593, 1.0
      %v2607 = vadd.f32 %v2595, 1.0
      %v2608 = vrcp.pop %v2596
      %v2609 = vmul.f32 %v2596, %v2608
      %v2610 = vsub.f32 1.0, %v2609
      %v2611 = vmul.f32 %v2608, %v2610
      %v2612 = vadd.f32 %v2608, %v2611
      %vm2613 = vweird.f32 %v2596
      %vm2614 = vweird.f32 %v2608
      %vm2615 = vmor %vm2613, %vm2614
      %v2616 = vsel %vm2615, %v2608, %v2612
      %v2617 = vand.u32 2147483647, %v2596
      %vm2618 = vcmp.eq.f32.partialorder %v2617, 8.507059e+37
      %v2619 = vand.u32 %v2596, 2147483648
      %v2620 = vor.u32 1.1754944e-38, %v2619
      %v2621 = vsel %vm2618, %v2620, %v2616
      %v2622 = vmul.f32 1.0, %v2621
      %v2623 = vrcp.pop %v2597
      %v2624 = vmul.f32 %v2597, %v2623
      %v2625 = vsub.f32 1.0, %v2624
      %v2626 = vmul.f32 %v2623, %v2625
      %v2627 = vadd.f32 %v2623, %v2626
      %vm2628 = vweird.f32 %v2597
      %vm2629 = vweird.f32 %v2623
      %vm2630 = vmor %vm2628, %vm2629
      %v2631 = vsel %vm2630, %v2623, %v2627
      %v2632 = vand.u32 2147483647, %v2597
      %vm2633 = vcmp.eq.f32.partialorder %v2632, 8.507059e+37
      %v2634 = vand.u32 %v2597, 2147483648
      %v2635 = vor.u32 1.1754944e-38, %v2634
      %v2636 = vsel %vm2633, %v2635, %v2631
      %v2637 = vmul.f32 1.0, %v2636
      %v2638 = vrcp.pop %v2598
      %v2639 = vmul.f32 %v2598, %v2638
      %v2640 = vsub.f32 1.0, %v2639
      %v2641 = vmul.f32 %v2638, %v2640
      %v2642 = vadd.f32 %v2638, %v2641
      %vm2643 = vweird.f32 %v2598
      %vm2644 = vweird.f32 %v2638
      %vm2645 = vmor %vm2643, %vm2644
      %v2646 = vsel %vm2645, %v2638, %v2642
      %v2647 = vand.u32 2147483647, %v2598
      %vm2648 = vcmp.eq.f32.partialorder %v2647, 8.507059e+37
      %v2649 = vand.u32 %v2598, 2147483648
      %v2650 = vor.u32 1.1754944e-38, %v2649
      %v2651 = vsel %vm2648, %v2650, %v2646
      %v2652 = vmul.f32 1.0, %v2651
      %v2653 = vrcp.pop %v2599
      %v2654 = vmul.f32 %v2599, %v2653
      %v2655 = vsub.f32 1.0, %v2654
      %v2656 = vmul.f32 %v2653, %v2655
      %v2657 = vadd.f32 %v2653, %v2656
      %vm2658 = vweird.f32 %v2599
      %vm2659 = vweird.f32 %v2653
      %vm2660 = vmor %vm2658, %vm2659
      %v2661 = vsel %vm2660, %v2653, %v2657
      %v2662 = vand.u32 2147483647, %v2599
      %vm2663 = vcmp.eq.f32.partialorder %v2662, 8.507059e+37
      %v2664 = vand.u32 %v2599, 2147483648
      %v2665 = vor.u32 1.1754944e-38, %v2664
      %v2666 = vsel %vm2663, %v2665, %v2661
      %v2667 = vmul.f32 1.0, %v2666
      %v2668 = vrcp.pop %v2600
      %v2669 = vmul.f32 %v2600, %v2668
      %v2670 = vsub.f32 1.0, %v2669
      %v2671 = vmul.f32 %v2668, %v2670
      %v2672 = vadd.f32 %v2668, %v2671
      %vm2673 = vweird.f32 %v2600
      %vm2674 = vweird.f32 %v2668
      %vm2675 = vmor %vm2673, %vm2674
      %v2676 = vsel %vm2675, %v2668, %v2672
      %v2677 = vand.u32 2147483647, %v2600
      %vm2678 = vcmp.eq.f32.partialorder %v2677, 8.507059e+37
      %v2679 = vand.u32 %v2600, 2147483648
      %v2680 = vor.u32 1.1754944e-38, %v2679
      %v2681 = vsel %vm2678, %v2680, %v2676
      %v2682 = vmul.f32 1.0, %v2681
      %v2683 = vrcp.pop %v2601
      %v2684 = vmul.f32 %v2601, %v2683
      %v2685 = vsub.f32 1.0, %v2684
      %v2686 = vmul.f32 %v2683, %v2685
      %v2687 = vadd.f32 %v2683, %v2686
      %vm2688 = vweird.f32 %v2601
      %vm2689 = vweird.f32 %v2683
      %vm2690 = vmor %vm2688, %vm2689
      %v2691 = vsel %vm2690, %v2683, %v2687
      %v2692 = vand.u32 2147483647, %v2601
      %vm2693 = vcmp.eq.f32.partialorder %v2692, 8.507059e+37
      %v2694 = vand.u32 %v2601, 2147483648
      %v2695 = vor.u32 1.1754944e-38, %v2694
      %v2696 = vsel %vm2693, %v2695, %v2691
      %v2697 = vmul.f32 1.0, %v2696
      %v2698 = vrcp.pop %v2602
      %v2699 = vmul.f32 %v2602, %v2698
      %v2700 = vsub.f32 1.0, %v2699
      %v2701 = vmul.f32 %v2698, %v2700
      %v2702 = vadd.f32 %v2698, %v2701
      %vm2703 = vweird.f32 %v2602
      %vm2704 = vweird.f32 %v2698
      %vm2705 = vmor %vm2703, %vm2704
      %v2706 = vsel %vm2705, %v2698, %v2702
      %v2707 = vand.u32 2147483647, %v2602
      %vm2708 = vcmp.eq.f32.partialorder %v2707, 8.507059e+37
      %v2709 = vand.u32 %v2602, 2147483648
      %v2710 = vor.u32 1.1754944e-38, %v2709
      %v2711 = vsel %vm2708, %v2710, %v2706
      %v2712 = vmul.f32 1.0, %v2711
      %v2713 = vrcp.pop %v2603
      %v2714 = vmul.f32 %v2603, %v2713
      %v2715 = vsub.f32 1.0, %v2714
      %v2716 = vmul.f32 %v2713, %v2715
      %v2717 = vadd.f32 %v2713, %v2716
      %vm2718 = vweird.f32 %v2603
      %vm2719 = vweird.f32 %v2713
      %vm2720 = vmor %vm2718, %vm2719
      %v2721 = vsel %vm2720, %v2713, %v2717
      %v2722 = vand.u32 2147483647, %v2603
      %vm2723 = vcmp.eq.f32.partialorder %v2722, 8.507059e+37
      %v2724 = vand.u32 %v2603, 2147483648
      %v2725 = vor.u32 1.1754944e-38, %v2724
      %v2726 = vsel %vm2723, %v2725, %v2721
      %v2727 = vmul.f32 1.0, %v2726
      %v2728 = vrcp.pop %v2604
      %v2729 = vmul.f32 %v2604, %v2728
      %v2730 = vsub.f32 1.0, %v2729
      %v2731 = vmul.f32 %v2728, %v2730
      %v2732 = vadd.f32 %v2728, %v2731
      %vm2733 = vweird.f32 %v2604
      %vm2734 = vweird.f32 %v2728
      %vm2735 = vmor %vm2733, %vm2734
      %v2736 = vsel %vm2735, %v2728, %v2732
      %v2737 = vand.u32 2147483647, %v2604
      %vm2738 = vcmp.eq.f32.partialorder %v2737, 8.507059e+37
      %v2739 = vand.u32 %v2604, 2147483648
      %v2740 = vor.u32 1.1754944e-38, %v2739
      %v2741 = vsel %vm2738, %v2740, %v2736
      %v2742 = vmul.f32 1.0, %v2741
      %v2743 = vrcp.pop %v2605
      %v2744 = vmul.f32 %v2605, %v2743
      %v2745 = vsub.f32 1.0, %v2744
      %v2746 = vmul.f32 %v2743, %v2745
      %v2747 = vadd.f32 %v2743, %v2746
      %vm2748 = vweird.f32 %v2605
      %vm2749 = vweird.f32 %v2743
      %vm2750 = vmor %vm2748, %vm2749
      %v2751 = vsel %vm2750, %v2743, %v2747
      %v2752 = vand.u32 2147483647, %v2605
      %vm2753 = vcmp.eq.f32.partialorder %v2752, 8.507059e+37
      %v2754 = vand.u32 %v2605, 2147483648
      %v2755 = vor.u32 1.1754944e-38, %v2754
      %v2756 = vsel %vm2753, %v2755, %v2751
      %v2757 = vmul.f32 1.0, %v2756
      %v2758 = vrcp.pop %v2606
      %v2759 = vmul.f32 %v2606, %v2758
      %v2760 = vsub.f32 1.0, %v2759
      %v2761 = vmul.f32 %v2758, %v2760
      %v2762 = vadd.f32 %v2758, %v2761
      %vm2763 = vweird.f32 %v2606
      %vm2764 = vweird.f32 %v2758
      %vm2765 = vmor %vm2763, %vm2764
      %v2766 = vsel %vm2765, %v2758, %v2762
      %v2767 = vand.u32 2147483647, %v2606
      %vm2768 = vcmp.eq.f32.partialorder %v2767, 8.507059e+37
      %v2769 = vand.u32 %v2606, 2147483648
      %v2770 = vor.u32 1.1754944e-38, %v2769
      %v2771 = vsel %vm2768, %v2770, %v2766
      %v2772 = vmul.f32 1.0, %v2771
      %v2773 = vrcp.pop %v2607
      %v2774 = vmul.f32 %v2607, %v2773
      %v2775 = vsub.f32 1.0, %v2774
      %v2776 = vmul.f32 %v2773, %v2775
      %v2777 = vadd.f32 %v2773, %v2776
      %vm2778 = vweird.f32 %v2607
      %vm2779 = vweird.f32 %v2773
      %vm2780 = vmor %vm2778, %vm2779
      %v2781 = vsel %vm2780, %v2773, %v2777
      %v2782 = vand.u32 2147483647, %v2607
      %vm2783 = vcmp.eq.f32.partialorder %v2782, 8.507059e+37
      %v2784 = vand.u32 %v2607, 2147483648
      %v2785 = vor.u32 1.1754944e-38, %v2784
      %v2786 = vsel %vm2783, %v2785, %v2781
      %v2787 = vmul.f32 1.0, %v2786
      %v2788 = vld [vmem:[%s273] sm:$0xff]
      %v2789 = vld [vmem:[%s273 + $0x8] sm:$0xff]
      %v2790 = vld [vmem:[%s273 + $0x10] sm:$0xff]
      %v2791 = vld [vmem:[%s273 + $0x18] sm:$0xff]
      %v2792 = vld [vmem:[%s273 + $0x20] sm:$0xff]
      %v2793 = vld [vmem:[%s273 + $0x28] sm:$0xff]
      %v2794 = vld [vmem:[%s273 + $0x30] sm:$0xff]
      %v2795 = vld [vmem:[%s273 + $0x38] sm:$0xff]
      %v2796 = vld [vmem:[%s273 + $0x40] sm:$0xff]
      %v2797 = vld [vmem:[%s273 + $0x48] sm:$0xff]
      %v2798 = vld [vmem:[%s273 + $0x50] sm:$0xff]
      %v2799 = vld [vmem:[%s273 + $0x58] sm:$0xff]
      %v2800 = vmul.f32 %v2382, %v2788
      %v2801 = vmul.f32 %v2397, %v2789
      %v2802 = vmul.f32 %v2412, %v2790
      %v2803 = vmul.f32 %v2427, %v2791
      %v2804 = vmul.f32 %v2442, %v2792
      %v2805 = vmul.f32 %v2457, %v2793
      %v2806 = vmul.f32 %v2472, %v2794
      %v2807 = vmul.f32 %v2487, %v2795
      %v2808 = vmul.f32 %v2502, %v2796
      %v2809 = vmul.f32 %v2517, %v2797
      %v2810 = vmul.f32 %v2532, %v2798
      %v2811 = vmul.f32 %v2547, %v2799
      %v2812 = vmul.f32 %v2154, %v2548
      %v2813 = vmul.f32 %v2169, %v2549
      %v2814 = vmul.f32 %v2184, %v2550
      %v2815 = vmul.f32 %v2199, %v2551
      %v2816 = vmul.f32 %v2214, %v2552
      %v2817 = vmul.f32 %v2229, %v2553
      %v2818 = vmul.f32 %v2244, %v2554
      %v2819 = vmul.f32 %v2259, %v2555
      %v2820 = vmul.f32 %v2274, %v2556
      %v2821 = vmul.f32 %v2289, %v2557
      %v2822 = vmul.f32 %v2304, %v2558
      %v2823 = vmul.f32 %v2319, %v2559
      %v2824 = vadd.f32 %v2800, %v2812
      %v2825 = vadd.f32 %v2801, %v2813
      %v2826 = vadd.f32 %v2802, %v2814
      %v2827 = vadd.f32 %v2803, %v2815
      %v2828 = vadd.f32 %v2804, %v2816
      %v2829 = vadd.f32 %v2805, %v2817
      %v2830 = vadd.f32 %v2806, %v2818
      %v2831 = vadd.f32 %v2807, %v2819
      %v2832 = vadd.f32 %v2808, %v2820
      %v2833 = vadd.f32 %v2809, %v2821
      %v2834 = vadd.f32 %v2810, %v2822
      %v2835 = vadd.f32 %v2811, %v2823
      %v2836 = vtanh.pop %v2824
      %v2837 = vtanh.pop %v2825
      %v2838 = vtanh.pop %v2826
      %v2839 = vtanh.pop %v2827
      %v2840 = vtanh.pop %v2828
      %v2841 = vtanh.pop %v2829
      %v2842 = vtanh.pop %v2830
      %v2843 = vtanh.pop %v2831
      %v2844 = vtanh.pop %v2832
      %v2845 = vtanh.pop %v2833
      %v2846 = vtanh.pop %v2834
      %v2847 = vtanh.pop %v2835
      %v2848 = vmul.f32 %v2622, %v2836
      %v2849 = vmul.f32 %v2637, %v2837
      %v2850 = vmul.f32 %v2652, %v2838
      %v2851 = vmul.f32 %v2667, %v2839
      %v2852 = vmul.f32 %v2682, %v2840
      %v2853 = vmul.f32 %v2697, %v2841
      %v2854 = vmul.f32 %v2712, %v2842
      %v2855 = vmul.f32 %v2727, %v2843
      %v2856 = vmul.f32 %v2742, %v2844
      %v2857 = vmul.f32 %v2757, %v2845
      %v2858 = vmul.f32 %v2772, %v2846
      %v2859 = vmul.f32 %v2787, %v2847
      %2860 = vst [vmem:[%s283] sm:$0xff] %v2848
      %2861 = vst [vmem:[%s283 + $0x8] sm:$0xff] %v2849
      %2862 = vst [vmem:[%s283 + $0x10] sm:$0xff] %v2850
      %2863 = vst [vmem:[%s283 + $0x18] sm:$0xff] %v2851
      %2864 = vst [vmem:[%s283 + $0x20] sm:$0xff] %v2852
      %2865 = vst [vmem:[%s283 + $0x28] sm:$0xff] %v2853
      %2866 = vst [vmem:[%s283 + $0x30] sm:$0xff] %v2854
      %2867 = vst [vmem:[%s283 + $0x38] sm:$0xff] %v2855
      %2868 = vst [vmem:[%s283 + $0x40] sm:$0xff] %v2856
      %2869 = vst [vmem:[%s283 + $0x48] sm:$0xff] %v2857
      %2870 = vst [vmem:[%s283 + $0x50] sm:$0xff] %v2858
      %2871 = vst [vmem:[%s283 + $0x58] sm:$0xff] %v2859
      %2872 = vst [vmem:[%s293] sm:$0xff] %v2824
      %2873 = vst [vmem:[%s293 + $0x8] sm:$0xff] %v2825
      %2874 = vst [vmem:[%s293 + $0x10] sm:$0xff] %v2826
      %2875 = vst [vmem:[%s293 + $0x18] sm:$0xff] %v2827
      %2876 = vst [vmem:[%s293 + $0x20] sm:$0xff] %v2828
      %2877 = vst [vmem:[%s293 + $0x28] sm:$0xff] %v2829
      %2878 = vst [vmem:[%s293 + $0x30] sm:$0xff] %v2830
      %2879 = vst [vmem:[%s293 + $0x38] sm:$0xff] %v2831
      %2880 = vst [vmem:[%s293 + $0x40] sm:$0xff] %v2832
      %2881 = vst [vmem:[%s293 + $0x48] sm:$0xff] %v2833
      %2882 = vst [vmem:[%s293 + $0x50] sm:$0xff] %v2834
      %2883 = vst [vmem:[%s293 + $0x58] sm:$0xff] %v2835
      %s2884 = smul.u32 3, %s21
      %p2885 = scmp.lt.s32.totalorder %s20, 1
      %s2886 = scalar_select %p2885, %s20, 1
      %p2887 = scmp.lt.s32.totalorder %s2884, 2
      %s2888 = scalar_select %p2887, %s2884, 2
      %s2889 = smul.addr %s2886, 12
      %s2890 = sadd.s32 %s2888, %s2889
      %s2891 = smul.addr %s2890, 8
      %s2892 = scalar_lea.vmem %s3, %s2891
      %s2893 = smul.u32 3, %s21
      %p2894 = scmp.lt.s32.totalorder %s20, 1
      %s2895 = scalar_select %p2894, %s20, 1
      %p2896 = scmp.lt.s32.totalorder %s2893, 2
      %s2897 = scalar_select %p2896, %s2893, 2
      %s2898 = smul.addr %s2895, 12
      %s2899 = sadd.s32 %s2897, %s2898
      %s2900 = smul.addr %s2899, 8
      %s2901 = scalar_lea.vmem %s4, %s2900
      // Predicated region
      $region33: #{convlstm_cell_forward.1} parent=31 // pred_check
        %p2902 = pneg %p125
      $region34: #{convlstm_cell_forward.1} parent=31 // pred_check_branch
        %2904 = sbr.rel (%p2902) target = $region36
      $region35: #{convlstm_cell_forward.1} parent=31 // pred_region
        %s2905 = smul.u32 3, %s21
      $region36: #{convlstm_cell_forward.1} parent=31 // pred_fallthru
        _
      // Predicated region
      $region37: #{convlstm_cell_forward.1} parent=31 // pred_check
        %p2906 = pneg %p153
      $region38: #{convlstm_cell_forward.1} parent=31 // pred_check_branch
        %2908 = sbr.rel (%p2906) target = $region40
      $region39: #{convlstm_cell_forward.1} parent=31 // pred_region
        %s2909 = smul.u32 3, %s21
      $region40: #{convlstm_cell_forward.1} parent=31 // pred_fallthru
        _
    $region32: #{convlstm_cell_forward.1} parent=5 // pred_fallthru
      _
    %p2910 = scmp.le.s32.totalorder 2, %s11
    // Predicated region
    $region41: #{convlstm_cell_forward.1} parent=5 // pred_check
      %p2911 = pneg %p2910
    $region42: #{convlstm_cell_forward.1} parent=5 // pred_check_branch
      %2913 = sbr.rel (%p2911) target = $region44
    $region43: #{convlstm_cell_forward.1} parent=5 // pred_region
      %s2914 = ssub.s32 %s11, 2
      // Predicated region
      $region45: #{convlstm_cell_forward.1} parent=43 // pred_check
        %p2915 = pneg %p131
      $region46: #{convlstm_cell_forward.1} parent=43 // pred_check_branch
        %2917 = sbr.rel (%p2915) target = $region48
      $region47: #{convlstm_cell_forward.1} parent=43 // pred_region
        %s2918 = smul.u32 3, %s23
        %p2919 = scmp.lt.s32.totalorder %s22, 1
        %s2920 = scalar_select %p2919, %s22, 1
        %p2921 = scmp.lt.s32.totalorder %s2918, 2
        %s2922 = scalar_select %p2921, %s2918, 2
        %s2923 = smul.addr %s2920, 12
        %s2924 = sadd.s32 %s2922, %s2923
        %s2925 = smul.addr %s2924, 8
        %s2926 = scalar_lea.vmem %s3, %s2925
      $region48: #{convlstm_cell_forward.1} parent=43 // pred_fallthru
        _
      // Predicated region
      $region49: #{convlstm_cell_forward.1} parent=43 // pred_check
        %p2927 = pneg %p159
      $region50: #{convlstm_cell_forward.1} parent=43 // pred_check_branch
        %2929 = sbr.rel (%p2927) target = $region52
      $region51: #{convlstm_cell_forward.1} parent=43 // pred_region
        %s2930 = smul.u32 3, %s23
        %p2931 = scmp.lt.s32.totalorder %s22, 1
        %s2932 = scalar_select %p2931, %s22, 1
        %p2933 = scmp.lt.s32.totalorder %s2930, 2
        %s2934 = scalar_select %p2933, %s2930, 2
        %s2935 = smul.addr %s2932, 12
        %s2936 = sadd.s32 %s2934, %s2935
        %s2937 = smul.addr %s2936, 8
        %s2938 = scalar_lea.vmem %s4, %s2937
      $region52: #{convlstm_cell_forward.1} parent=43 // pred_fallthru
        _
    $region44: #{convlstm_cell_forward.1} parent=5 // pred_fallthru
      _
  $region6: #{convlstm_cell_forward.1} parent=0 // loop_footer
    %s15 = sadd.s32 1, %s11
  $region7: #{convlstm_cell_forward.1} parent=0 // loop_footer_branch
    %10 = sbr.rel target = $region3
  $region8: #{convlstm_cell_forward.1} parent=0 // loop_exit
    _

</llo_original>
